<compile_context>
chip_gen: v7x
topology: tpu7x:2x2x1
jax: 0.10.0
libtpu: 0.0.40
codegen_flags: <defaults>
</compile_context>

<pallas_src>
import jax
import jax.numpy as jnp
from jax import lax
from jax.experimental import pallas as pl
from jax.experimental.pallas import tpu as pltpu


# ----------------------------------------------------------------------------
# Fixed small configuration.
# ----------------------------------------------------------------------------
_N = 2                 # batch (kernel is hard-wired to this)
_CIN = 4               # input channels
_H = 16                # input spatial size (H = W)
_K = 3                 # conv kernel size
_HP1 = _H + 2          # padded rows/cols for conv1 input (18)
_C1 = 8                # conv1 out channels
_P1 = _H // 2          # spatial after pool1 (8)
_C2 = 16               # conv2 out channels
_P2 = _P1 // 2         # spatial after pool2 (4)
_CLASSES = 5
_FC_HID = 32
_PAIRS1 = _P1 // 2     # pooled-row pairs per sample after pool1 (4)
_K1 = 6 * _HP1 * _CIN  # conv1 contraction length: 6 padded rows x 72 lanes = 432
_N1 = 2 * 2 * 2 * _P1 * _C1          # conv1 dot width: vpar|hpar|rpar|j1|c1 = 512
_K2 = 3 * 2 * _P1 * _C1              # conv2 contraction: dp|rpar|j1|c1 = 384
_N2 = 2 * 2 * _P2 * _C2              # conv2 dot width: vpar|hpar|j2|c2 = 256
_FLAT = _P2 * _P2 * _C2              # flatten features = 256

_VMEM = pl.BlockSpec(memory_space=pltpu.MemorySpace.VMEM)


# ----------------------------------------------------------------------------
# Single fused kernel: conv1+relu+pool1 -> conv2+relu+pool2 -> fc1+relu -> fc2
# -> softmax.  Four MXU pushes total, no strided scratch round trips.
# ----------------------------------------------------------------------------
def _convnet_fused_kernel(x_ref,       # (8, 432)  bf16: conv1 im2col LHS (batch folded)
                          w1_ref,      # (432, 512) bf16: conv1+pool banded weights
                          w2_ref,      # (384, 256) bf16: conv2+pool banded weights
                          fcw_ref,     # (288, 32)  bf16: rows 0:256 fc1, 256:288 fc2 (cols>=5 zero)
                          bias_ref,    # (4, 128)   f32: packed b1 / b2 / fc1_b / fc2_b
                          out_ref,     # (2, 5)     f32
                          lhs2_scr,    # (8, 384)   f32 scratch: conv2 im2col LHS
                          fcin_scr):   # (2, 256)   f32 scratch: flattened fc1 input
    f32 = jnp.float32
    bf16 = jnp.bfloat16
    bias = bias_ref[...]                                        # (4, 128)

    # ---- conv1 + bias + ReLU + 2x2 max-pool: ONE matmul ---------------------
    # output lanes = vpar*256 + hpar*128 + rpar*64 + j1*8 + c1
    acc1 = jnp.dot(x_ref[...], w1_ref[...], preferred_element_type=f32)   # (8, 512)
    t1 = jnp.maximum(acc1[:, :256], acc1[:, 256:])              # vertical half of pool
    p1 = jnp.maximum(t1[:, :128], t1[:, 128:])                  # horizontal half (8, 128)
    p1 = jnp.maximum(p1 + bias[0:1, :], 0.0)                    # bias+ReLU (monotone w.r.t. max)
    # p1 rows = n*4 + pair, lanes = rpar*64 + j1*8 + c1

    # ---- build conv2 im2col LHS in VMEM (zero rows are the spatial padding) --
    lhs2_scr[...] = jnp.zeros_like(lhs2_scr)
    lhs2_scr[:, 128:256] = p1                                   # pair offset dp = 1 (same pair)
    for n in range(_N):
        b = n * _PAIRS1
        lhs2_scr[b + 1:b + 4, 0:128] = p1[b:b + 3]              # dp = 0 (pair above)
        lhs2_scr[b:b + 3, 256:384] = p1[b + 1:b + 4]            # dp = 2 (pair below)

    # ---- conv2 + bias + ReLU + 2x2 max-pool: ONE matmul ---------------------
    # output lanes = vpar*128 + hpar*64 + j2*16 + c2
    acc2 = jnp.dot(lhs2_scr[...].astype(bf16), w2_ref[...],
                   preferred_element_type=f32)                  # (8, 256)
    t2 = jnp.maximum(acc2[:, :128], acc2[:, 128:])
    p2 = jnp.maximum(t2[:, :64], t2[:, 64:])                    # (8, 64): rows = n*4 + r2
    p2 = jnp.maximum(p2 + bias[1:2, 0:64], 0.0)

    # ---- flatten: scatter the 4 pooled rows of each sample into lanes --------
    # fcin lanes = r2*64 + j2*16 + c2 (PyTorch NCHW flatten folded into fc1w)
    for n in range(_N):
        for r2 in range(_P2):
            fcin_scr[n:n + 1, r2 * 64:(r2 + 1) * 64] = \
                p2[n * _P2 + r2:n * _P2 + r2 + 1, :]

    # ---- fc1 + ReLU, fc2, exact softmax --------------------------------------
    fcw = fcw_ref[...]                                          # (288, 32)
    y1 = jnp.dot(fcin_scr[...].astype(bf16), fcw[0:_FLAT, :],
                 preferred_element_type=f32)                    # (2, 32)
    y1 = jnp.maximum(y1 + bias[2:3, 0:_FC_HID], 0.0)
    y2 = jnp.dot(y1.astype(bf16), fcw[_FLAT:_FLAT + _FC_HID, :],
                 preferred_element_type=f32)                    # (2, 32), cols >= 5 are zero
    y2 = (y2 + bias[3:4, 0:_FC_HID])[:, 0:_CLASSES]             # (2, 5) logits
    m = jnp.max(y2, axis=1, keepdims=True)
    e = jnp.exp(y2 - m)
    out_ref[...] = e / jnp.sum(e, axis=1, keepdims=True)


# ----------------------------------------------------------------------------
# One-time weight preparation: conv weights -> fused conv+pool banded matrices,
# fc1 flatten fold, fc2 pad, bias packing.  All done once outside the hot path.
# ----------------------------------------------------------------------------
def _axes(*sizes):
    """Open (broadcastable) index grids for vectorized weight construction."""
    out = []
    for i, s in enumerate(sizes):
        shape = [1] * len(sizes)
        shape[i] = s
        out.append(jnp.arange(s).reshape(shape))
    return out


def _build_w1(w1_oihw):
    """(C1, Cin, 3, 3) -> (432, 512) fused conv1 + 2x2-pool matrix.

    Row   = dr*72 + j*4 + ci      (dr: padded-row offset within the 6-row window,
                                   j: padded col 0..17, ci: in channel)
    Col   = vpar*256 + hpar*128 + rpar*64 + j1*8 + c1
            (conv row 4*rp + 2*rpar + vpar, conv col 2*j1 + hpar, channel c1)"""
    dr, j, ci, vp, hp, rp, j1, c1 = _axes(6, _HP1, _CIN, 2, 2, 2, _P1, _C1)
    kh = dr - 2 * rp - vp
    kw = j - 2 * j1 - hp
    valid = (kh >= 0) & (kh < _K) & (kw >= 0) & (kw < _K)
    vals = w1_oihw[c1, ci, jnp.clip(kh, 0, _K - 1), jnp.clip(kw, 0, _K - 1)]
    vals = jnp.where(valid, vals, 0.0)
    return vals.reshape(_K1, _N1)


def _build_w2(w2_oihw):
    """(C2, C1, 3, 3) -> (384, 256) fused conv2 + 2x2-pool matrix.

    Row   = dp*128 + rpar*64 + j1*8 + c1   (dp: pooled-row-pair offset 0..2)
    Col   = vpar*128 + hpar*64 + j2*16 + c2"""
    dp, rp, j1, c1, vp, hp, j2, c2 = _axes(3, 2, _P1, _C1, 2, 2, _P2, _C2)
    kh = 2 * dp + rp - 1 - vp
    kw = j1 + 1 - 2 * j2 - hp
    valid = (kh >= 0) & (kh < _K) & (kw >= 0) & (kw < _K)
    vals = w2_oihw[c2, c1, jnp.clip(kh, 0, _K - 1), jnp.clip(kw, 0, _K - 1)]
    vals = jnp.where(valid, vals, 0.0)
    return vals.reshape(_K2, _N2)


def prepare_operands(p):
    """PyTorch-layout parameters -> the 4 weight/bias slabs the kernel consumes."""
    w1 = _build_w1(p["w1"]).astype(jnp.bfloat16)                 # (432, 512)
    w2 = _build_w2(p["w2"]).astype(jnp.bfloat16)                 # (384, 256)

    # fc1: PyTorch flatten index f = c2*16 + i2*4 + j2; kernel fcin lane =
    # r2*64 + j2*16 + c2 (i2 == r2), so permute accordingly.
    fc1w = p["fc1_w"].reshape(_FC_HID, _C2, _P2, _P2)            # (h, c2, i2, j2)
    fc1w = jnp.transpose(fc1w, (2, 3, 1, 0)).reshape(_FLAT, _FC_HID)
    fc2w = jnp.zeros((_FC_HID, _FC_HID), jnp.float32).at[:, :_CLASSES].set(p["fc2_w"].T)
    fcw = jnp.concatenate([fc1w, fc2w], axis=0).astype(jnp.bfloat16)  # (288, 32)

    bias = jnp.zeros((4, 128), jnp.float32)
    bias = bias.at[0, :].set(jnp.tile(p["b1"], 2 * _P1))         # lane = rpar*64+j1*8+c1
    bias = bias.at[1, : _P2 * _C2].set(jnp.tile(p["b2"], _P2))   # lane = j2*16+c2
    bias = bias.at[2, :_FC_HID].set(p["fc1_b"])
    bias = bias.at[3, :_CLASSES].set(p["fc2_b"])

    return dict(w1=w1, w2=w2, fcw=fcw, bias=bias)


@jax.jit
def convnet_forward_pallas(x_nchw, ops):
    """Full ConvNet forward.  x: (2, 4, 16, 16) float32 (PyTorch layout)."""
    if x_nchw.shape != (_N, _CIN, _H, _H):
        raise ValueError(f"kernel is specialized to {(_N, _CIN, _H, _H)}, "
                         f"got {x_nchw.shape}")
    # cheap XLA-side layout prep: NCHW -> NHWC, zero-pad spatial, build the
    # conv1 im2col LHS: row (n, rp) holds padded rows 4*rp .. 4*rp+5 (72 lanes each).
    xn = jnp.transpose(x_nchw, (0, 2, 3, 1))
    xp = jnp.pad(xn, ((0, 0), (1, 1), (1, 1), (0, 0)))           # (N, 18, 18, 4)
    x2 = xp.reshape(_N, _HP1, _HP1 * _CIN)                       # (N, 18, 72)
    lhs1 = jnp.concatenate([x2[:, dr:dr + 13:4, :] for dr in range(6)], axis=-1)
    lhs1 = lhs1.reshape(_N * _PAIRS1, _K1).astype(jnp.bfloat16)  # (8, 432)

    return pl.pallas_call(
        _convnet_fused_kernel,
        out_shape=jax.ShapeDtypeStruct((_N, _CLASSES), jnp.float32),
        in_specs=[_VMEM] * 5,
        out_specs=_VMEM,
        scratch_shapes=[
            pltpu.VMEM((_N * _PAIRS1, _K2), jnp.float32),        # conv2 im2col LHS
            pltpu.VMEM((_N, _FLAT), jnp.float32),                # flattened fc1 input
        ],
    )(lhs1, ops["w1"], ops["w2"], ops["fcw"], ops["bias"])


# ----------------------------------------------------------------------------
# Pure-JAX reference (mirrors PyTorch NCHW semantics) for validation.
# ----------------------------------------------------------------------------
def convnet_forward_ref(x, p):
    dn = ("NCHW", "OIHW", "NCHW")
    y = lax.conv_general_dilated(x, p["w1"], (1, 1), ((1, 1), (1, 1)),
                                 dimension_numbers=dn)
    y = jnp.maximum(y + p["b1"][None, :, None, None], 0.0)
    y = lax.reduce_window(y, -jnp.inf, lax.max, (1, 1, 2, 2), (1, 1, 2, 2), "VALID")
    y = lax.conv_general_dilated(y, p["w2"], (1, 1), ((1, 1), (1, 1)),
                                 dimension_numbers=dn)
    y = jnp.maximum(y + p["b2"][None, :, None, None], 0.0)
    y = lax.reduce_window(y, -jnp.inf, lax.max, (1, 1, 2, 2), (1, 1, 2, 2), "VALID")
    y = y.reshape(y.shape[0], -1)
    y = jnp.maximum(y @ p["fc1_w"].T + p["fc1_b"], 0.0)
    y = y @ p["fc2_w"].T + p["fc2_b"]
    return jax.nn.softmax(y, axis=1)


# ----------------------------------------------------------------------------
def _init_params(key):
    ks = jax.random.split(key, 8)
    s = 0.1
    return {
        "w1": s * jax.random.normal(ks[0], (_C1, _CIN, _K, _K), jnp.float32),   # OIHW
        "b1": s * jax.random.normal(ks[1], (_C1,), jnp.float32),
        "w2": s * jax.random.normal(ks[2], (_C2, _C1, _K, _K), jnp.float32),
        "b2": s * jax.random.normal(ks[3], (_C2,), jnp.float32),
        "fc1_w": s * jax.random.normal(ks[4], (_FC_HID, _FLAT), jnp.float32),
        "fc1_b": s * jax.random.normal(ks[5], (_FC_HID,), jnp.float32),
        "fc2_w": s * jax.random.normal(ks[6], (_CLASSES, _FC_HID), jnp.float32),
        "fc2_b": s * jax.random.normal(ks[7], (_CLASSES,), jnp.float32),
    }


if __name__ == "__main__":
    root = jax.random.PRNGKey(0)
    kp, kx = jax.random.split(root)
    params = _init_params(kp)
    x = jax.random.normal(kx, (_N, _CIN, _H, _H), jnp.float32)   # NCHW, like PyTorch

    ops = prepare_operands(params)                 # one-time weight re-layout
    out = convnet_forward_pallas(x, ops)
    out = jax.block_until_ready(out)

    ref = convnet_forward_ref(x, params)
    assert out.shape == (_N, _CLASSES), out.shape
    # exact softmax divide -> rows sum to 1 up to f32 rounding
    assert jnp.allclose(jnp.sum(out, axis=1), 1.0, atol=1e-3), jnp.sum(out, axis=1)
    # tolerances account for bf16 weights/activations on the MXU path
    assert jnp.allclose(out, ref, atol=1e-2, rtol=1e-2), (out, ref)
    print("KERNEL_OK")
</pallas_src>

<mosaic_0001>
module attributes {stable_mosaic.version = 11 : i64} {
  func.func @_convnet_fused_kernel(%arg0: memref<8x432xbf16, #tpu.memory_space<vmem>>, %arg1: memref<432x512xbf16, #tpu.memory_space<vmem>>, %arg2: memref<384x256xbf16, #tpu.memory_space<vmem>>, %arg3: memref<288x32xbf16, #tpu.memory_space<vmem>>, %arg4: memref<4x128xf32, #tpu.memory_space<vmem>>, %arg5: memref<2x5xf32, #tpu.memory_space<vmem>>, %arg6: memref<8x384xf32, #tpu.memory_space<vmem>>, %arg7: memref<2x256xf32, #tpu.memory_space<vmem>>) attributes {dimension_semantics = [], scalar_prefetch = 0 : i64, scratch_operands = 2 : i64, tpu.core_type = #tpu.core_type<tc>} {
    %c0 = arith.constant 0 : index
    %c0_0 = arith.constant 0 : index
    %0 = vector.load %arg4[%c0, %c0_0] : memref<4x128xf32, #tpu.memory_space<vmem>>, vector<4x128xf32>
    %c0_1 = arith.constant 0 : index
    %c0_2 = arith.constant 0 : index
    %1 = vector.load %arg0[%c0_1, %c0_2] : memref<8x432xbf16, #tpu.memory_space<vmem>>, vector<8x432xbf16>
    %c0_3 = arith.constant 0 : index
    %c0_4 = arith.constant 0 : index
    %2 = vector.load %arg1[%c0_3, %c0_4] : memref<432x512xbf16, #tpu.memory_space<vmem>>, vector<432x512xbf16>
    %cst = arith.constant dense<0.000000e+00> : vector<8x512xf32>
    %3 = tpu.matmul %1, %2, %cst {dimension_numbers = #tpu.dot_dimension_numbers<[1], [0], [0], [1], [0, 0, 1, 1], [], []>} : vector<8x432xbf16>, vector<432x512xbf16>, vector<8x512xf32> -> vector<8x512xf32>
    %4 = vector.extract_strided_slice %3 {offsets = [0, 0], sizes = [8, 256], strides = [1, 1]} : vector<8x512xf32> to vector<8x256xf32>
    %5 = vector.extract_strided_slice %3 {offsets = [0, 256], sizes = [8, 256], strides = [1, 1]} : vector<8x512xf32> to vector<8x256xf32>
    %6 = arith.maximumf %4, %5 : vector<8x256xf32>
    %7 = vector.extract_strided_slice %6 {offsets = [0, 0], sizes = [8, 128], strides = [1, 1]} : vector<8x256xf32> to vector<8x128xf32>
    %8 = vector.extract_strided_slice %6 {offsets = [0, 128], sizes = [8, 128], strides = [1, 1]} : vector<8x256xf32> to vector<8x128xf32>
    %9 = arith.maximumf %7, %8 : vector<8x128xf32>
    %10 = vector.extract_strided_slice %0 {offsets = [0, 0], sizes = [1, 128], strides = [1, 1]} : vector<4x128xf32> to vector<1x128xf32>
    %11 = vector.broadcast %10 : vector<1x128xf32> to vector<8x128xf32>
    %12 = arith.addf %9, %11 : vector<8x128xf32>
    %cst_5 = arith.constant 0.000000e+00 : f32
    %13 = vector.broadcast %cst_5 : f32 to vector<8x128xf32>
    %14 = arith.maximumf %12, %13 : vector<8x128xf32>
    %cst_6 = arith.constant 0.000000e+00 : f32
    %15 = vector.broadcast %cst_6 : f32 to vector<8x384xf32>
    %c0_7 = arith.constant 0 : index
    %c0_8 = arith.constant 0 : index
    %16 = vector.load %arg6[%c0_7, %c0_8] : memref<8x384xf32, #tpu.memory_space<vmem>>, vector<8x384xf32>
    tpu.vector_store %arg6[%c0_7, %c0_8], %15 {strides = array<i32>} : memref<8x384xf32, #tpu.memory_space<vmem>>, vector<8x384xf32>,
    %c0_9 = arith.constant 0 : index
    %c128 = arith.constant 128 : index
    %17 = vector.load %arg6[%c0_9, %c128] : memref<8x384xf32, #tpu.memory_space<vmem>>, vector<8x128xf32>
    tpu.vector_store %arg6[%c0_9, %c128], %14 {strides = array<i32>} : memref<8x384xf32, #tpu.memory_space<vmem>>, vector<8x128xf32>,
    %18 = vector.extract_strided_slice %14 {offsets = [0, 0], sizes = [3, 128], strides = [1, 1]} : vector<8x128xf32> to vector<3x128xf32>
    %c1 = arith.constant 1 : index
    %c0_10 = arith.constant 0 : index
    %19 = vector.load %arg6[%c1, %c0_10] : memref<8x384xf32, #tpu.memory_space<vmem>>, vector<3x128xf32>
    tpu.vector_store %arg6[%c1, %c0_10], %18 {strides = array<i32>} : memref<8x384xf32, #tpu.memory_space<vmem>>, vector<3x128xf32>,
    %20 = vector.extract_strided_slice %14 {offsets = [1, 0], sizes = [3, 128], strides = [1, 1]} : vector<8x128xf32> to vector<3x128xf32>
    %c0_11 = arith.constant 0 : index
    %c256 = arith.constant 256 : index
    %21 = vector.load %arg6[%c0_11, %c256] : memref<8x384xf32, #tpu.memory_space<vmem>>, vector<3x128xf32>
    tpu.vector_store %arg6[%c0_11, %c256], %20 {strides = array<i32>} : memref<8x384xf32, #tpu.memory_space<vmem>>, vector<3x128xf32>,
    %22 = vector.extract_strided_slice %14 {offsets = [4, 0], sizes = [3, 128], strides = [1, 1]} : vector<8x128xf32> to vector<3x128xf32>
    %c5 = arith.constant 5 : index
    %c0_12 = arith.constant 0 : index
    %23 = vector.load %arg6[%c5, %c0_12] : memref<8x384xf32, #tpu.memory_space<vmem>>, vector<3x128xf32>
    tpu.vector_store %arg6[%c5, %c0_12], %22 {strides = array<i32>} : memref<8x384xf32, #tpu.memory_space<vmem>>, vector<3x128xf32>,
    %24 = vector.extract_strided_slice %14 {offsets = [5, 0], sizes = [3, 128], strides = [1, 1]} : vector<8x128xf32> to vector<3x128xf32>
    %c4 = arith.constant 4 : index
    %c256_13 = arith.constant 256 : index
    %25 = vector.load %arg6[%c4, %c256_13] : memref<8x384xf32, #tpu.memory_space<vmem>>, vector<3x128xf32>
    tpu.vector_store %arg6[%c4, %c256_13], %24 {strides = array<i32>} : memref<8x384xf32, #tpu.memory_space<vmem>>, vector<3x128xf32>,
    %c0_14 = arith.constant 0 : index
    %c0_15 = arith.constant 0 : index
    %26 = vector.load %arg6[%c0_14, %c0_15] : memref<8x384xf32, #tpu.memory_space<vmem>>, vector<8x384xf32>
    %27 = arith.truncf %26 : vector<8x384xf32> to vector<8x384xbf16>
    %c0_16 = arith.constant 0 : index
    %c0_17 = arith.constant 0 : index
    %28 = vector.load %arg2[%c0_16, %c0_17] : memref<384x256xbf16, #tpu.memory_space<vmem>>, vector<384x256xbf16>
    %cst_18 = arith.constant dense<0.000000e+00> : vector<8x256xf32>
    %29 = tpu.matmul %27, %28, %cst_18 {dimension_numbers = #tpu.dot_dimension_numbers<[1], [0], [0], [1], [0, 0, 1, 1], [], []>} : vector<8x384xbf16>, vector<384x256xbf16>, vector<8x256xf32> -> vector<8x256xf32>
    %30 = vector.extract_strided_slice %29 {offsets = [0, 0], sizes = [8, 128], strides = [1, 1]} : vector<8x256xf32> to vector<8x128xf32>
    %31 = vector.extract_strided_slice %29 {offsets = [0, 128], sizes = [8, 128], strides = [1, 1]} : vector<8x256xf32> to vector<8x128xf32>
    %32 = arith.maximumf %30, %31 : vector<8x128xf32>
    %33 = vector.extract_strided_slice %32 {offsets = [0, 0], sizes = [8, 64], strides = [1, 1]} : vector<8x128xf32> to vector<8x64xf32>
    %34 = vector.extract_strided_slice %32 {offsets = [0, 64], sizes = [8, 64], strides = [1, 1]} : vector<8x128xf32> to vector<8x64xf32>
    %35 = arith.maximumf %33, %34 : vector<8x64xf32>
    %36 = vector.extract_strided_slice %0 {offsets = [1, 0], sizes = [1, 64], strides = [1, 1]} : vector<4x128xf32> to vector<1x64xf32>
    %37 = vector.broadcast %36 : vector<1x64xf32> to vector<8x64xf32>
    %38 = arith.addf %35, %37 : vector<8x64xf32>
    %cst_19 = arith.constant 0.000000e+00 : f32
    %39 = vector.broadcast %cst_19 : f32 to vector<8x64xf32>
    %40 = arith.maximumf %38, %39 : vector<8x64xf32>
    %41 = vector.extract_strided_slice %40 {offsets = [0, 0], sizes = [1, 64], strides = [1, 1]} : vector<8x64xf32> to vector<1x64xf32>
    %c0_20 = arith.constant 0 : index
    %c0_21 = arith.constant 0 : index
    %42 = vector.load %arg7[%c0_20, %c0_21] : memref<2x256xf32, #tpu.memory_space<vmem>>, vector<1x64xf32>
    tpu.vector_store %arg7[%c0_20, %c0_21], %41 {strides = array<i32>} : memref<2x256xf32, #tpu.memory_space<vmem>>, vector<1x64xf32>,
    %43 = vector.extract_strided_slice %40 {offsets = [1, 0], sizes = [1, 64], strides = [1, 1]} : vector<8x64xf32> to vector<1x64xf32>
    %c0_22 = arith.constant 0 : index
    %c64 = arith.constant 64 : index
    %44 = vector.load %arg7[%c0_22, %c64] : memref<2x256xf32, #tpu.memory_space<vmem>>, vector<1x64xf32>
    tpu.vector_store %arg7[%c0_22, %c64], %43 {strides = array<i32>} : memref<2x256xf32, #tpu.memory_space<vmem>>, vector<1x64xf32>,
    %45 = vector.extract_strided_slice %40 {offsets = [2, 0], sizes = [1, 64], strides = [1, 1]} : vector<8x64xf32> to vector<1x64xf32>
    %c0_23 = arith.constant 0 : index
    %c128_24 = arith.constant 128 : index
    %46 = vector.load %arg7[%c0_23, %c128_24] : memref<2x256xf32, #tpu.memory_space<vmem>>, vector<1x64xf32>
    tpu.vector_store %arg7[%c0_23, %c128_24], %45 {strides = array<i32>} : memref<2x256xf32, #tpu.memory_space<vmem>>, vector<1x64xf32>,
    %47 = vector.extract_strided_slice %40 {offsets = [3, 0], sizes = [1, 64], strides = [1, 1]} : vector<8x64xf32> to vector<1x64xf32>
    %c0_25 = arith.constant 0 : index
    %c192 = arith.constant 192 : index
    %48 = vector.load %arg7[%c0_25, %c192] : memref<2x256xf32, #tpu.memory_space<vmem>>, vector<1x64xf32>
    tpu.vector_store %arg7[%c0_25, %c192], %47 {strides = array<i32>} : memref<2x256xf32, #tpu.memory_space<vmem>>, vector<1x64xf32>,
    %49 = vector.extract_strided_slice %40 {offsets = [4, 0], sizes = [1, 64], strides = [1, 1]} : vector<8x64xf32> to vector<1x64xf32>
    %c1_26 = arith.constant 1 : index
    %c0_27 = arith.constant 0 : index
    %50 = vector.load %arg7[%c1_26, %c0_27] : memref<2x256xf32, #tpu.memory_space<vmem>>, vector<1x64xf32>
    tpu.vector_store %arg7[%c1_26, %c0_27], %49 {strides = array<i32>} : memref<2x256xf32, #tpu.memory_space<vmem>>, vector<1x64xf32>,
    %51 = vector.extract_strided_slice %40 {offsets = [5, 0], sizes = [1, 64], strides = [1, 1]} : vector<8x64xf32> to vector<1x64xf32>
    %c1_28 = arith.constant 1 : index
    %c64_29 = arith.constant 64 : index
    %52 = vector.load %arg7[%c1_28, %c64_29] : memref<2x256xf32, #tpu.memory_space<vmem>>, vector<1x64xf32>
    tpu.vector_store %arg7[%c1_28, %c64_29], %51 {strides = array<i32>} : memref<2x256xf32, #tpu.memory_space<vmem>>, vector<1x64xf32>,
    %53 = vector.extract_strided_slice %40 {offsets = [6, 0], sizes = [1, 64], strides = [1, 1]} : vector<8x64xf32> to vector<1x64xf32>
    %c1_30 = arith.constant 1 : index
    %c128_31 = arith.constant 128 : index
    %54 = vector.load %arg7[%c1_30, %c128_31] : memref<2x256xf32, #tpu.memory_space<vmem>>, vector<1x64xf32>
    tpu.vector_store %arg7[%c1_30, %c128_31], %53 {strides = array<i32>} : memref<2x256xf32, #tpu.memory_space<vmem>>, vector<1x64xf32>,
    %55 = vector.extract_strided_slice %40 {offsets = [7, 0], sizes = [1, 64], strides = [1, 1]} : vector<8x64xf32> to vector<1x64xf32>
    %c1_32 = arith.constant 1 : index
    %c192_33 = arith.constant 192 : index
    %56 = vector.load %arg7[%c1_32, %c192_33] : memref<2x256xf32, #tpu.memory_space<vmem>>, vector<1x64xf32>
    tpu.vector_store %arg7[%c1_32, %c192_33], %55 {strides = array<i32>} : memref<2x256xf32, #tpu.memory_space<vmem>>, vector<1x64xf32>,
    %c0_34 = arith.constant 0 : index
    %c0_35 = arith.constant 0 : index
    %57 = vector.load %arg3[%c0_34, %c0_35] : memref<288x32xbf16, #tpu.memory_space<vmem>>, vector<288x32xbf16>
    %c0_36 = arith.constant 0 : index
    %c0_37 = arith.constant 0 : index
    %58 = vector.load %arg7[%c0_36, %c0_37] : memref<2x256xf32, #tpu.memory_space<vmem>>, vector<2x256xf32>
    %59 = arith.truncf %58 : vector<2x256xf32> to vector<2x256xbf16>
    %60 = vector.extract_strided_slice %57 {offsets = [0, 0], sizes = [256, 32], strides = [1, 1]} : vector<288x32xbf16> to vector<256x32xbf16>
    %cst_38 = arith.constant dense<0.000000e+00> : vector<2x32xf32>
    %61 = tpu.matmul %59, %60, %cst_38 {dimension_numbers = #tpu.dot_dimension_numbers<[1], [0], [0], [1], [0, 0, 1, 1], [], []>} : vector<2x256xbf16>, vector<256x32xbf16>, vector<2x32xf32> -> vector<2x32xf32>
    %62 = vector.extract_strided_slice %0 {offsets = [2, 0], sizes = [1, 32], strides = [1, 1]} : vector<4x128xf32> to vector<1x32xf32>
    %63 = vector.broadcast %62 : vector<1x32xf32> to vector<2x32xf32>
    %64 = arith.addf %61, %63 : vector<2x32xf32>
    %cst_39 = arith.constant 0.000000e+00 : f32
    %65 = vector.broadcast %cst_39 : f32 to vector<2x32xf32>
    %66 = arith.maximumf %64, %65 : vector<2x32xf32>
    %67 = arith.truncf %66 : vector<2x32xf32> to vector<2x32xbf16>
    %68 = vector.extract_strided_slice %57 {offsets = [256, 0], sizes = [32, 32], strides = [1, 1]} : vector<288x32xbf16> to vector<32x32xbf16>
    %cst_40 = arith.constant dense<0.000000e+00> : vector<2x32xf32>
    %69 = tpu.matmul %67, %68, %cst_40 {dimension_numbers = #tpu.dot_dimension_numbers<[1], [0], [0], [1], [0, 0, 1, 1], [], []>} : vector<2x32xbf16>, vector<32x32xbf16>, vector<2x32xf32> -> vector<2x32xf32>
    %70 = vector.extract_strided_slice %0 {offsets = [3, 0], sizes = [1, 32], strides = [1, 1]} : vector<4x128xf32> to vector<1x32xf32>
    %71 = vector.broadcast %70 : vector<1x32xf32> to vector<2x32xf32>
    %72 = arith.addf %69, %71 : vector<2x32xf32>
    %73 = vector.extract_strided_slice %72 {offsets = [0, 0], sizes = [2, 5], strides = [1, 1]} : vector<2x32xf32> to vector<2x5xf32>
    %cst_41 = arith.constant dense<0xFF800000> : vector<2xf32>
    %74 = vector.multi_reduction <maximumf>, %73, %cst_41 [1] : vector<2x5xf32> to vector<2xf32>
    %75 = vector.shape_cast %74 : vector<2xf32> to vector<2x1xf32>
    %76 = vector.broadcast %75 : vector<2x1xf32> to vector<2x5xf32>
    %77 = arith.subf %73, %76 : vector<2x5xf32>
    %78 = math.exp %77 : vector<2x5xf32>
    %cst_42 = arith.constant dense<0.000000e+00> : vector<2xf32>
    %79 = vector.multi_reduction <add>, %78, %cst_42 [1] : vector<2x5xf32> to vector<2xf32>
    %80 = vector.shape_cast %79 : vector<2xf32> to vector<2x1xf32>
    %81 = vector.broadcast %80 : vector<2x1xf32> to vector<2x5xf32>
    %82 = arith.divf %78, %81 : vector<2x5xf32>
    %c0_43 = arith.constant 0 : index
    %c0_44 = arith.constant 0 : index
    %83 = vector.load %arg5[%c0_43, %c0_44] : memref<2x5xf32, #tpu.memory_space<vmem>>, vector<2x5xf32>
    tpu.vector_store %arg5[%c0_43, %c0_44], %82 {strides = array<i32>} : memref<2x5xf32, #tpu.memory_space<vmem>>, vector<2x5xf32>,
    return
  }
}

</mosaic_0001>

<llo_original>
// kernel: convnet_forward_pallas.1
$region0: #{convnet_forward_pallas.1}
  #allocation0 [shape = 'u32[]', space=smem, size = 0x4, offset = 0x4, fixed_abs, tag = 'smem constant byte address 0x4 - core index']
  #allocation1 [shape = 'u32[144,128]{1,0:T(1,128)}', space=vmem, size = 0x12000, scoped, tag = 'internal scratch']
  #allocation2 [shape = 'f32[8,384]{1,0:T(8,128)}', space=vmem, size = 0x3000, scoped, tag = 'scratch operand']
  #allocation3 [shape = 'f32[2,256]{1,0:T(2,128)}', space=vmem, size = 0x800, scoped, tag = 'scratch operand']
  %s0 = inlined_call_operand.vmem [shape: bf16[8,432], index: 0, kind: input, shape index: {}]
  %s1 = inlined_call_operand.vmem [shape: bf16[432,512], index: 1, kind: input, shape index: {}]
  %s2 = inlined_call_operand.vmem [shape: bf16[384,256], index: 2, kind: input, shape index: {}]
  %s3 = inlined_call_operand.vmem [shape: bf16[288,32], index: 3, kind: input, shape index: {}]
  %s4 = inlined_call_operand.vmem [shape: f32[4,128], index: 4, kind: input, shape index: {}]
  %s5 = inlined_call_operand.hbm [shape: f32[2,5], index: 5, kind: output, shape index: {}]
  %s6 = sld [smem:[#allocation0]]
  $region30: #{convnet_forward_pallas.1} parent=0
    _
  %s8 = ssub.s32 1, %s6
  %s9 = scalar_select 0, %s8, %s6
  $region1: #{convnet_forward_pallas.1} parent=0
    #allocation4 [shape = 'u8[1024]{0}', space=vmem, size = 0x400, scoped, tag = 'output window, operand 0, single buffered']
    #allocation5 [shape = 's32[1]{0}', space=sflag, size = 0x4, scoped, tag = 'scoped memory for convnet_forward_pallas.1']
    %10 = vsyncpa [#allocation5], 0
    // Predicated region
    $region2: #{convnet_forward_pallas.1} parent=1 // pred_check
      _
    $region3: #{convnet_forward_pallas.1} parent=1 // pred_check_branch
      %12 = sbr.rel (0) target = $region5
    $region4: #{convnet_forward_pallas.1} parent=1 // pred_region
      _
    $region5: #{convnet_forward_pallas.1} parent=1 // pred_fallthru
      _
    // Predicated region
    $region6: #{convnet_forward_pallas.1} parent=1 // pred_check
      _
    $region7: #{convnet_forward_pallas.1} parent=1 // pred_check_branch
      %14 = sbr.rel (0) target = $region9
    $region8: #{convnet_forward_pallas.1} parent=1 // pred_region
      _
    $region9: #{convnet_forward_pallas.1} parent=1 // pred_fallthru
      _
    // Predicated region
    $region10: #{convnet_forward_pallas.1} parent=1 // pred_check
      _
    $region11: #{convnet_forward_pallas.1} parent=1 // pred_check_branch
      %16 = sbr.rel (0) target = $region13
    $region12: #{convnet_forward_pallas.1} parent=1 // pred_region
      _
    $region13: #{convnet_forward_pallas.1} parent=1 // pred_fallthru
      _
    // Predicated region
    $region14: #{convnet_forward_pallas.1} parent=1 // pred_check
      _
    $region15: #{convnet_forward_pallas.1} parent=1 // pred_check_branch
      %18 = sbr.rel (0) target = $region17
    $region16: #{convnet_forward_pallas.1} parent=1 // pred_region
      _
    $region17: #{convnet_forward_pallas.1} parent=1 // pred_fallthru
      _
    // Predicated region
    $region18: #{convnet_forward_pallas.1} parent=1 // pred_check
      _
    $region19: #{convnet_forward_pallas.1} parent=1 // pred_check_branch
      %20 = sbr.rel (0) target = $region21
    $region20: #{convnet_forward_pallas.1} parent=1 // pred_region
      _
    $region21: #{convnet_forward_pallas.1} parent=1 // pred_fallthru
      _
    %v22 = vld [vmem:[%s4] sm:$0xf]
    %v23 = vld [vmem:[%s0] sm:$0xff]
    %v24 = vld [vmem:[%s0 + $0x8] sm:$0xff]
    %v25 = vld [vmem:[%s1] sm:$0xff]
    %v26 = vld [vmem:[%s1 + $0x8] sm:$0xff]
    %v27 = vld [vmem:[%s1 + $0x10] sm:$0xff]
    %v28 = vld [vmem:[%s1 + $0x18] sm:$0xff]
    %v29 = vld [vmem:[%s1 + $0x20] sm:$0xff]
    %v30 = vld [vmem:[%s1 + $0x28] sm:$0xff]
    %v31 = vld [vmem:[%s1 + $0x30] sm:$0xff]
    %v32 = vld [vmem:[%s1 + $0x38] sm:$0xff]
    %v33 = vld [vmem:[%s1 + $0x40] sm:$0xff]
    %v34 = vld [vmem:[%s1 + $0x48] sm:$0xff]
    %v35 = vld [vmem:[%s1 + $0x50] sm:$0xff]
    %v36 = vld [vmem:[%s1 + $0x58] sm:$0xff]
    %v37 = vld [vmem:[%s1 + $0x60] sm:$0xff]
    %v38 = vld [vmem:[%s1 + $0x68] sm:$0xff]
    %v39 = vld [vmem:[%s1 + $0x70] sm:$0xff]
    %v40 = vld [vmem:[%s1 + $0x78] sm:$0xff]
    %v41 = vld [vmem:[%s1 + $0x80] sm:$0xff]
    %v42 = vld [vmem:[%s1 + $0x88] sm:$0xff]
    %v43 = vld [vmem:[%s1 + $0x90] sm:$0xff]
    %v44 = vld [vmem:[%s1 + $0x98] sm:$0xff]
    %v45 = vld [vmem:[%s1 + $0xa0] sm:$0xff]
    %v46 = vld [vmem:[%s1 + $0xa8] sm:$0xff]
    %v47 = vld [vmem:[%s1 + $0xb0] sm:$0xff]
    %v48 = vld [vmem:[%s1 + $0xb8] sm:$0xff]
    %v49 = vld [vmem:[%s1 + $0xc0] sm:$0xff]
    %v50 = vld [vmem:[%s1 + $0xc8] sm:$0xff]
    %v51 = vld [vmem:[%s1 + $0xd0] sm:$0xff]
    %v52 = vld [vmem:[%s1 + $0xd8] sm:$0xff]
    %v53 = vld [vmem:[%s1 + $0xe0] sm:$0xff]
    %v54 = vld [vmem:[%s1 + $0xe8] sm:$0xff]
    %v55 = vld [vmem:[%s1 + $0xf0] sm:$0xff]
    %v56 = vld [vmem:[%s1 + $0xf8] sm:$0xff]
    %v57 = vld [vmem:[%s1 + $0x100] sm:$0xff]
    %v58 = vld [vmem:[%s1 + $0x108] sm:$0xff]
    %v59 = vld [vmem:[%s1 + $0x110] sm:$0xff]
    %v60 = vld [vmem:[%s1 + $0x118] sm:$0xff]
    %v61 = vld [vmem:[%s1 + $0x120] sm:$0xff]
    %v62 = vld [vmem:[%s1 + $0x128] sm:$0xff]
    %v63 = vld [vmem:[%s1 + $0x130] sm:$0xff]
    %v64 = vld [vmem:[%s1 + $0x138] sm:$0xff]
    %v65 = vld [vmem:[%s1 + $0x140] sm:$0xff]
    %v66 = vld [vmem:[%s1 + $0x148] sm:$0xff]
    %v67 = vld [vmem:[%s1 + $0x150] sm:$0xff]
    %v68 = vld [vmem:[%s1 + $0x158] sm:$0xff]
    %v69 = vld [vmem:[%s1 + $0x160] sm:$0xff]
    %v70 = vld [vmem:[%s1 + $0x168] sm:$0xff]
    %v71 = vld [vmem:[%s1 + $0x170] sm:$0xff]
    %v72 = vld [vmem:[%s1 + $0x178] sm:$0xff]
    %v73 = vld [vmem:[%s1 + $0x180] sm:$0xff]
    %v74 = vld [vmem:[%s1 + $0x188] sm:$0xff]
    %v75 = vld [vmem:[%s1 + $0x190] sm:$0xff]
    %v76 = vld [vmem:[%s1 + $0x198] sm:$0xff]
    %v77 = vld [vmem:[%s1 + $0x1a0] sm:$0xff]
    %v78 = vld [vmem:[%s1 + $0x1a8] sm:$0xff]
    %v79 = vld [vmem:[%s1 + $0x1b0] sm:$0xff]
    %v80 = vld [vmem:[%s1 + $0x1b8] sm:$0xff]
    %v81 = vld [vmem:[%s1 + $0x1c0] sm:$0xff]
    %v82 = vld [vmem:[%s1 + $0x1c8] sm:$0xff]
    %v83 = vld [vmem:[%s1 + $0x1d0] sm:$0xff]
    %v84 = vld [vmem:[%s1 + $0x1d8] sm:$0xff]
    %v85 = vld [vmem:[%s1 + $0x1e0] sm:$0xff]
    %v86 = vld [vmem:[%s1 + $0x1e8] sm:$0xff]
    %v87 = vld [vmem:[%s1 + $0x1f0] sm:$0xff]
    %v88 = vld [vmem:[%s1 + $0x1f8] sm:$0xff]
    %v89 = vld [vmem:[%s1 + $0x200] sm:$0xff]
    %v90 = vld [vmem:[%s1 + $0x208] sm:$0xff]
    %v91 = vld [vmem:[%s1 + $0x210] sm:$0xff]
    %v92 = vld [vmem:[%s1 + $0x218] sm:$0xff]
    %v93 = vld [vmem:[%s1 + $0x220] sm:$0xff]
    %v94 = vld [vmem:[%s1 + $0x228] sm:$0xff]
    %v95 = vld [vmem:[%s1 + $0x230] sm:$0xff]
    %v96 = vld [vmem:[%s1 + $0x238] sm:$0xff]
    %v97 = vld [vmem:[%s1 + $0x240] sm:$0xff]
    %v98 = vld [vmem:[%s1 + $0x248] sm:$0xff]
    %v99 = vld [vmem:[%s1 + $0x250] sm:$0xff]
    %v100 = vld [vmem:[%s1 + $0x258] sm:$0xff]
    %v101 = vld [vmem:[%s1 + $0x260] sm:$0xff]
    %v102 = vld [vmem:[%s1 + $0x268] sm:$0xff]
    %v103 = vld [vmem:[%s1 + $0x270] sm:$0xff]
    %v104 = vld [vmem:[%s1 + $0x278] sm:$0xff]
    %v105 = vld [vmem:[%s1 + $0x280] sm:$0xff]
    %v106 = vld [vmem:[%s1 + $0x288] sm:$0xff]
    %v107 = vld [vmem:[%s1 + $0x290] sm:$0xff]
    %v108 = vld [vmem:[%s1 + $0x298] sm:$0xff]
    %v109 = vld [vmem:[%s1 + $0x2a0] sm:$0xff]
    %v110 = vld [vmem:[%s1 + $0x2a8] sm:$0xff]
    %v111 = vld [vmem:[%s1 + $0x2b0] sm:$0xff]
    %v112 = vld [vmem:[%s1 + $0x2b8] sm:$0xff]
    %v113 = vld [vmem:[%s1 + $0x2c0] sm:$0xff]
    %v114 = vld [vmem:[%s1 + $0x2c8] sm:$0xff]
    %v115 = vld [vmem:[%s1 + $0x2d0] sm:$0xff]
    %v116 = vld [vmem:[%s1 + $0x2d8] sm:$0xff]
    %v117 = vld [vmem:[%s1 + $0x2e0] sm:$0xff]
    %v118 = vld [vmem:[%s1 + $0x2e8] sm:$0xff]
    %v119 = vld [vmem:[%s1 + $0x2f0] sm:$0xff]
    %v120 = vld [vmem:[%s1 + $0x2f8] sm:$0xff]
    %v121 = vld [vmem:[%s1 + $0x300] sm:$0xff]
    %v122 = vld [vmem:[%s1 + $0x308] sm:$0xff]
    %v123 = vld [vmem:[%s1 + $0x310] sm:$0xff]
    %v124 = vld [vmem:[%s1 + $0x318] sm:$0xff]
    %v125 = vld [vmem:[%s1 + $0x320] sm:$0xff]
    %v126 = vld [vmem:[%s1 + $0x328] sm:$0xff]
    %v127 = vld [vmem:[%s1 + $0x330] sm:$0xff]
    %v128 = vld [vmem:[%s1 + $0x338] sm:$0xff]
    %v129 = vld [vmem:[%s1 + $0x340] sm:$0xff]
    %v130 = vld [vmem:[%s1 + $0x348] sm:$0xff]
    %v131 = vld [vmem:[%s1 + $0x350] sm:$0xff]
    %v132 = vld [vmem:[%s1 + $0x358] sm:$0xff]
    %v135 = vunpack.c.l.b16 %v23
    %v136 = vunpack.c.h.b16 %v23
    %v137 = vunpack.c.l.b16 %v24
    %v138 = vunpack.c.h.b16 %v24
    %v139 = vpack.c.b16 %v135, %v135
    %v140 = vpack.c.b16 %v136, %v136
    %v141 = vpack.c.b16 %v137, %v137
    %v142 = vpack.c.b16 %v138, %v138
    %v254 = vunpack.c.l.b16 %v25
    %v255 = vunpack.c.h.b16 %v25
    %v256 = vunpack.c.l.b16 %v26
    %v257 = vunpack.c.h.b16 %v26
    %v258 = vunpack.c.l.b16 %v27
    %v259 = vunpack.c.h.b16 %v27
    %v260 = vunpack.c.l.b16 %v28
    %v261 = vunpack.c.h.b16 %v28
    %v262 = vunpack.c.l.b16 %v29
    %v263 = vunpack.c.h.b16 %v29
    %v264 = vunpack.c.l.b16 %v30
    %v265 = vunpack.c.h.b16 %v30
    %v266 = vunpack.c.l.b16 %v31
    %v267 = vunpack.c.h.b16 %v31
    %v268 = vunpack.c.l.b16 %v32
    %v269 = vunpack.c.h.b16 %v32
    %v270 = vunpack.c.l.b16 %v33
    %v271 = vunpack.c.h.b16 %v33
    %v272 = vunpack.c.l.b16 %v34
    %v273 = vunpack.c.h.b16 %v34
    %v274 = vunpack.c.l.b16 %v35
    %v275 = vunpack.c.h.b16 %v35
    %v276 = vunpack.c.l.b16 %v36
    %v277 = vunpack.c.h.b16 %v36
    %v278 = vunpack.c.l.b16 %v37
    %v279 = vunpack.c.h.b16 %v37
    %v280 = vunpack.c.l.b16 %v38
    %v281 = vunpack.c.h.b16 %v38
    %v282 = vunpack.c.l.b16 %v39
    %v283 = vunpack.c.h.b16 %v39
    %v284 = vunpack.c.l.b16 %v40
    %v285 = vunpack.c.h.b16 %v40
    %v286 = vunpack.c.l.b16 %v41
    %v287 = vunpack.c.h.b16 %v41
    %v288 = vunpack.c.l.b16 %v42
    %v289 = vunpack.c.h.b16 %v42
    %v290 = vunpack.c.l.b16 %v43
    %v291 = vunpack.c.h.b16 %v43
    %v292 = vunpack.c.l.b16 %v44
    %v293 = vunpack.c.h.b16 %v44
    %v294 = vunpack.c.l.b16 %v45
    %v295 = vunpack.c.h.b16 %v45
    %v296 = vunpack.c.l.b16 %v46
    %v297 = vunpack.c.h.b16 %v46
    %v298 = vunpack.c.l.b16 %v47
    %v299 = vunpack.c.h.b16 %v47
    %v300 = vunpack.c.l.b16 %v48
    %v301 = vunpack.c.h.b16 %v48
    %v302 = vunpack.c.l.b16 %v49
    %v303 = vunpack.c.h.b16 %v49
    %v304 = vunpack.c.l.b16 %v50
    %v305 = vunpack.c.h.b16 %v50
    %v306 = vunpack.c.l.b16 %v51
    %v307 = vunpack.c.h.b16 %v51
    %v308 = vunpack.c.l.b16 %v52
    %v309 = vunpack.c.h.b16 %v52
    %v310 = vunpack.c.l.b16 %v53
    %v311 = vunpack.c.h.b16 %v53
    %v312 = vunpack.c.l.b16 %v54
    %v313 = vunpack.c.h.b16 %v54
    %v314 = vunpack.c.l.b16 %v55
    %v315 = vunpack.c.h.b16 %v55
    %v316 = vunpack.c.l.b16 %v56
    %v317 = vunpack.c.h.b16 %v56
    %v318 = vunpack.c.l.b16 %v57
    %v319 = vunpack.c.h.b16 %v57
    %v320 = vunpack.c.l.b16 %v58
    %v321 = vunpack.c.h.b16 %v58
    %v322 = vunpack.c.l.b16 %v59
    %v323 = vunpack.c.h.b16 %v59
    %v324 = vunpack.c.l.b16 %v60
    %v325 = vunpack.c.h.b16 %v60
    %v326 = vunpack.c.l.b16 %v61
    %v327 = vunpack.c.h.b16 %v61
    %v328 = vunpack.c.l.b16 %v62
    %v329 = vunpack.c.h.b16 %v62
    %v330 = vunpack.c.l.b16 %v63
    %v331 = vunpack.c.h.b16 %v63
    %v332 = vunpack.c.l.b16 %v64
    %v333 = vunpack.c.h.b16 %v64
    %v334 = vunpack.c.l.b16 %v65
    %v335 = vunpack.c.h.b16 %v65
    %v336 = vunpack.c.l.b16 %v66
    %v337 = vunpack.c.h.b16 %v66
    %v338 = vunpack.c.l.b16 %v67
    %v339 = vunpack.c.h.b16 %v67
    %v340 = vunpack.c.l.b16 %v68
    %v341 = vunpack.c.h.b16 %v68
    %v342 = vunpack.c.l.b16 %v69
    %v343 = vunpack.c.h.b16 %v69
    %v344 = vunpack.c.l.b16 %v70
    %v345 = vunpack.c.h.b16 %v70
    %v346 = vunpack.c.l.b16 %v71
    %v347 = vunpack.c.h.b16 %v71
    %v348 = vunpack.c.l.b16 %v72
    %v349 = vunpack.c.h.b16 %v72
    %v350 = vunpack.c.l.b16 %v73
    %v351 = vunpack.c.h.b16 %v73
    %v352 = vunpack.c.l.b16 %v74
    %v353 = vunpack.c.h.b16 %v74
    %v354 = vunpack.c.l.b16 %v75
    %v355 = vunpack.c.h.b16 %v75
    %v356 = vunpack.c.l.b16 %v76
    %v357 = vunpack.c.h.b16 %v76
    %v358 = vunpack.c.l.b16 %v77
    %v359 = vunpack.c.h.b16 %v77
    %v360 = vunpack.c.l.b16 %v78
    %v361 = vunpack.c.h.b16 %v78
    %v362 = vunpack.c.l.b16 %v79
    %v363 = vunpack.c.h.b16 %v79
    %v364 = vunpack.c.l.b16 %v80
    %v365 = vunpack.c.h.b16 %v80
    %v366 = vunpack.c.l.b16 %v81
    %v367 = vunpack.c.h.b16 %v81
    %v368 = vunpack.c.l.b16 %v82
    %v369 = vunpack.c.h.b16 %v82
    %v370 = vunpack.c.l.b16 %v83
    %v371 = vunpack.c.h.b16 %v83
    %v372 = vunpack.c.l.b16 %v84
    %v373 = vunpack.c.h.b16 %v84
    %v374 = vunpack.c.l.b16 %v85
    %v375 = vunpack.c.h.b16 %v85
    %v376 = vunpack.c.l.b16 %v86
    %v377 = vunpack.c.h.b16 %v86
    %v378 = vunpack.c.l.b16 %v87
    %v379 = vunpack.c.h.b16 %v87
    %v380 = vunpack.c.l.b16 %v88
    %v381 = vunpack.c.h.b16 %v88
    %v382 = vunpack.c.l.b16 %v89
    %v383 = vunpack.c.h.b16 %v89
    %v384 = vunpack.c.l.b16 %v90
    %v385 = vunpack.c.h.b16 %v90
    %v386 = vunpack.c.l.b16 %v91
    %v387 = vunpack.c.h.b16 %v91
    %v388 = vunpack.c.l.b16 %v92
    %v389 = vunpack.c.h.b16 %v92
    %v390 = vunpack.c.l.b16 %v93
    %v391 = vunpack.c.h.b16 %v93
    %v392 = vunpack.c.l.b16 %v94
    %v393 = vunpack.c.h.b16 %v94
    %v394 = vunpack.c.l.b16 %v95
    %v395 = vunpack.c.h.b16 %v95
    %v396 = vunpack.c.l.b16 %v96
    %v397 = vunpack.c.h.b16 %v96
    %v398 = vunpack.c.l.b16 %v97
    %v399 = vunpack.c.h.b16 %v97
    %v400 = vunpack.c.l.b16 %v98
    %v401 = vunpack.c.h.b16 %v98
    %v402 = vunpack.c.l.b16 %v99
    %v403 = vunpack.c.h.b16 %v99
    %v404 = vunpack.c.l.b16 %v100
    %v405 = vunpack.c.h.b16 %v100
    %v406 = vunpack.c.l.b16 %v101
    %v407 = vunpack.c.h.b16 %v101
    %v408 = vunpack.c.l.b16 %v102
    %v409 = vunpack.c.h.b16 %v102
    %v410 = vunpack.c.l.b16 %v103
    %v411 = vunpack.c.h.b16 %v103
    %v412 = vunpack.c.l.b16 %v104
    %v413 = vunpack.c.h.b16 %v104
    %v414 = vunpack.c.l.b16 %v105
    %v415 = vunpack.c.h.b16 %v105
    %v416 = vunpack.c.l.b16 %v106
    %v417 = vunpack.c.h.b16 %v106
    %v418 = vunpack.c.l.b16 %v107
    %v419 = vunpack.c.h.b16 %v107
    %v420 = vunpack.c.l.b16 %v108
    %v421 = vunpack.c.h.b16 %v108
    %v422 = vunpack.c.l.b16 %v109
    %v423 = vunpack.c.h.b16 %v109
    %v424 = vunpack.c.l.b16 %v110
    %v425 = vunpack.c.h.b16 %v110
    %v426 = vunpack.c.l.b16 %v111
    %v427 = vunpack.c.h.b16 %v111
    %v428 = vunpack.c.l.b16 %v112
    %v429 = vunpack.c.h.b16 %v112
    %v430 = vunpack.c.l.b16 %v113
    %v431 = vunpack.c.h.b16 %v113
    %v432 = vunpack.c.l.b16 %v114
    %v433 = vunpack.c.h.b16 %v114
    %v434 = vunpack.c.l.b16 %v115
    %v435 = vunpack.c.h.b16 %v115
    %v436 = vunpack.c.l.b16 %v116
    %v437 = vunpack.c.h.b16 %v116
    %v438 = vunpack.c.l.b16 %v117
    %v439 = vunpack.c.h.b16 %v117
    %v440 = vunpack.c.l.b16 %v118
    %v441 = vunpack.c.h.b16 %v118
    %v442 = vunpack.c.l.b16 %v119
    %v443 = vunpack.c.h.b16 %v119
    %v444 = vunpack.c.l.b16 %v120
    %v445 = vunpack.c.h.b16 %v120
    %v446 = vunpack.c.l.b16 %v121
    %v447 = vunpack.c.h.b16 %v121
    %v448 = vunpack.c.l.b16 %v122
    %v449 = vunpack.c.h.b16 %v122
    %v450 = vunpack.c.l.b16 %v123
    %v451 = vunpack.c.h.b16 %v123
    %v452 = vunpack.c.l.b16 %v124
    %v453 = vunpack.c.h.b16 %v124
    %v454 = vunpack.c.l.b16 %v125
    %v455 = vunpack.c.h.b16 %v125
    %v456 = vunpack.c.l.b16 %v126
    %v457 = vunpack.c.h.b16 %v126
    %v458 = vunpack.c.l.b16 %v127
    %v459 = vunpack.c.h.b16 %v127
    %v460 = vunpack.c.l.b16 %v128
    %v461 = vunpack.c.h.b16 %v128
    %v462 = vunpack.c.l.b16 %v129
    %v463 = vunpack.c.h.b16 %v129
    %v464 = vunpack.c.l.b16 %v130
    %v465 = vunpack.c.h.b16 %v130
    %v466 = vunpack.c.l.b16 %v131
    %v467 = vunpack.c.h.b16 %v131
    %v468 = vunpack.c.l.b16 %v132
    %v469 = vunpack.c.h.b16 %v132
    %v470 = vpack.c.b16 %v258, %v254
    %v471 = vpack.c.b16 %v259, %v255
    %v472 = vpack.c.b16 %v260, %v256
    %v473 = vpack.c.b16 %v261, %v257
    %v474 = vpack.c.b16 %v266, %v262
    %v475 = vpack.c.b16 %v267, %v263
    %v476 = vpack.c.b16 %v268, %v264
    %v477 = vpack.c.b16 %v269, %v265
    %v478 = vpack.c.b16 %v274, %v270
    %v479 = vpack.c.b16 %v275, %v271
    %v480 = vpack.c.b16 %v276, %v272
    %v481 = vpack.c.b16 %v277, %v273
    %v482 = vpack.c.b16 %v282, %v278
    %v483 = vpack.c.b16 %v283, %v279
    %v484 = vpack.c.b16 %v284, %v280
    %v485 = vpack.c.b16 %v285, %v281
    %v486 = vpack.c.b16 %v290, %v286
    %v487 = vpack.c.b16 %v291, %v287
    %v488 = vpack.c.b16 %v292, %v288
    %v489 = vpack.c.b16 %v293, %v289
    %v490 = vpack.c.b16 %v298, %v294
    %v491 = vpack.c.b16 %v299, %v295
    %v492 = vpack.c.b16 %v300, %v296
    %v493 = vpack.c.b16 %v301, %v297
    %v494 = vpack.c.b16 %v306, %v302
    %v495 = vpack.c.b16 %v307, %v303
    %v496 = vpack.c.b16 %v308, %v304
    %v497 = vpack.c.b16 %v309, %v305
    %v498 = vpack.c.b16 %v314, %v310
    %v499 = vpack.c.b16 %v315, %v311
    %v500 = vpack.c.b16 %v316, %v312
    %v501 = vpack.c.b16 %v317, %v313
    %v502 = vpack.c.b16 %v322, %v318
    %v503 = vpack.c.b16 %v323, %v319
    %v504 = vpack.c.b16 %v324, %v320
    %v505 = vpack.c.b16 %v325, %v321
    %v506 = vpack.c.b16 %v330, %v326
    %v507 = vpack.c.b16 %v331, %v327
    %v508 = vpack.c.b16 %v332, %v328
    %v509 = vpack.c.b16 %v333, %v329
    %v510 = vpack.c.b16 %v338, %v334
    %v511 = vpack.c.b16 %v339, %v335
    %v512 = vpack.c.b16 %v340, %v336
    %v513 = vpack.c.b16 %v341, %v337
    %v514 = vpack.c.b16 %v346, %v342
    %v515 = vpack.c.b16 %v347, %v343
    %v516 = vpack.c.b16 %v348, %v344
    %v517 = vpack.c.b16 %v349, %v345
    %v518 = vpack.c.b16 %v354, %v350
    %v519 = vpack.c.b16 %v355, %v351
    %v520 = vpack.c.b16 %v356, %v352
    %v521 = vpack.c.b16 %v357, %v353
    %v522 = vpack.c.b16 %v362, %v358
    %v523 = vpack.c.b16 %v363, %v359
    %v524 = vpack.c.b16 %v364, %v360
    %v525 = vpack.c.b16 %v365, %v361
    %v526 = vpack.c.b16 %v370, %v366
    %v527 = vpack.c.b16 %v371, %v367
    %v528 = vpack.c.b16 %v372, %v368
    %v529 = vpack.c.b16 %v373, %v369
    %v530 = vpack.c.b16 %v378, %v374
    %v531 = vpack.c.b16 %v379, %v375
    %v532 = vpack.c.b16 %v380, %v376
    %v533 = vpack.c.b16 %v381, %v377
    %v534 = vpack.c.b16 %v386, %v382
    %v535 = vpack.c.b16 %v387, %v383
    %v536 = vpack.c.b16 %v388, %v384
    %v537 = vpack.c.b16 %v389, %v385
    %v538 = vpack.c.b16 %v394, %v390
    %v539 = vpack.c.b16 %v395, %v391
    %v540 = vpack.c.b16 %v396, %v392
    %v541 = vpack.c.b16 %v397, %v393
    %v542 = vpack.c.b16 %v402, %v398
    %v543 = vpack.c.b16 %v403, %v399
    %v544 = vpack.c.b16 %v404, %v400
    %v545 = vpack.c.b16 %v405, %v401
    %v546 = vpack.c.b16 %v410, %v406
    %v547 = vpack.c.b16 %v411, %v407
    %v548 = vpack.c.b16 %v412, %v408
    %v549 = vpack.c.b16 %v413, %v409
    %v550 = vpack.c.b16 %v418, %v414
    %v551 = vpack.c.b16 %v419, %v415
    %v552 = vpack.c.b16 %v420, %v416
    %v553 = vpack.c.b16 %v421, %v417
    %v554 = vpack.c.b16 %v426, %v422
    %v555 = vpack.c.b16 %v427, %v423
    %v556 = vpack.c.b16 %v428, %v424
    %v557 = vpack.c.b16 %v429, %v425
    %v558 = vpack.c.b16 %v434, %v430
    %v559 = vpack.c.b16 %v435, %v431
    %v560 = vpack.c.b16 %v436, %v432
    %v561 = vpack.c.b16 %v437, %v433
    %v562 = vpack.c.b16 %v442, %v438
    %v563 = vpack.c.b16 %v443, %v439
    %v564 = vpack.c.b16 %v444, %v440
    %v565 = vpack.c.b16 %v445, %v441
    %v566 = vpack.c.b16 %v450, %v446
    %v567 = vpack.c.b16 %v451, %v447
    %v568 = vpack.c.b16 %v452, %v448
    %v569 = vpack.c.b16 %v453, %v449
    %v570 = vpack.c.b16 %v458, %v454
    %v571 = vpack.c.b16 %v459, %v455
    %v572 = vpack.c.b16 %v460, %v456
    %v573 = vpack.c.b16 %v461, %v457
    %v574 = vpack.c.b16 %v466, %v462
    %v575 = vpack.c.b16 %v467, %v463
    %v576 = vpack.c.b16 %v468, %v464
    %v577 = vpack.c.b16 %v469, %v465
    %vm686 = vcmask 392192
    %v688 = vsel %vm686, %v142, 0
    %690 = vmatprep.subr.bf16.mxu0 %v471
    %691 = vmatpush1.bf16.msra.mxu0 %v470
    %692 = vmatprep.subr.bf16.mxu0 %v475
    %693 = vmatpush1.bf16.msra.mxu0 %v474
    %694 = vmatprep.subr.bf16.mxu0 %v479
    %695 = vmatpush1.bf16.msra.mxu0 %v478
    %696 = vmatprep.subr.bf16.mxu0 %v483
    %697 = vmatpush1.bf16.msra.mxu0 %v482
    %698 = vmatprep.subr.bf16.mxu0 %v487
    %699 = vmatpush1.bf16.msra.mxu0 %v486
    %700 = vmatprep.subr.bf16.mxu0 %v491
    %701 = vmatpush1.bf16.msra.mxu0 %v490
    %702 = vmatprep.subr.bf16.mxu0 %v495
    %703 = vmatpush1.bf16.msra.mxu0 %v494
    %704 = vmatprep.subr.bf16.mxu0 %v499
    %705 = vmatpush1.bf16.msra.mxu0 %v498
    %706 = vmatprep.subr.bf16.mxu0 %v503
    %707 = vmatpush1.bf16.msra.mxu0 %v502
    %708 = vmatprep.subr.bf16.mxu0 %v507
    %709 = vmatpush1.bf16.msra.mxu0 %v506
    %710 = vmatprep.subr.bf16.mxu0 %v511
    %711 = vmatpush1.bf16.msra.mxu0 %v510
    %712 = vmatprep.subr.bf16.mxu0 %v515
    %713 = vmatpush1.bf16.msra.mxu0 %v514
    %714 = vmatprep.subr.bf16.mxu0 %v519
    %715 = vmatpush1.bf16.msra.mxu0 %v518
    %716 = vmatprep.subr.bf16.mxu0 %v523
    %717 = vmatpush1.bf16.msra.mxu0 %v522
    %718 = vmatprep.subr.bf16.mxu0 %v527
    %719 = vmatpush1.bf16.msra.mxu0 %v526
    %720 = vmatprep.subr.bf16.mxu0 %v531
    %721 = vmatpush1.bf16.msra.mxu0 %v530
    %722 = vmatprep.mubr.bf16.mxu0 %v140
    %723 = vmatmul.mubr.bf16.gmra.mrb[0].mxu0 %v139
    %v724 = vpop.f32.mrb[0].mxu0
    %v725 = vadd.f32 0.0, %v724
    %v726 = vpop.f32.mrb[0].mxu0
    %v727 = vadd.f32 0.0, %v726
    %v728 = vpop.f32.mrb[0].mxu0
    %v729 = vpop.f32.mrb[0].mxu0
    %730 = vdwg.mxu0
    %731 = vmatprep.subr.bf16.mxu0 %v535
    %732 = vmatpush1.bf16.msra.mxu0 %v534
    %733 = vmatprep.subr.bf16.mxu0 %v539
    %734 = vmatpush1.bf16.msra.mxu0 %v538
    %735 = vmatprep.subr.bf16.mxu0 %v543
    %736 = vmatpush1.bf16.msra.mxu0 %v542
    %737 = vmatprep.subr.bf16.mxu0 %v547
    %738 = vmatpush1.bf16.msra.mxu0 %v546
    %739 = vmatprep.subr.bf16.mxu0 %v551
    %740 = vmatpush1.bf16.msra.mxu0 %v550
    %741 = vmatprep.subr.bf16.mxu0 %v555
    %742 = vmatpush1.bf16.msra.mxu0 %v554
    %743 = vmatprep.subr.bf16.mxu0 %v559
    %744 = vmatpush1.bf16.msra.mxu0 %v558
    %745 = vmatprep.subr.bf16.mxu0 %v563
    %746 = vmatpush1.bf16.msra.mxu0 %v562
    %747 = vmatprep.subr.bf16.mxu0 %v567
    %748 = vmatpush1.bf16.msra.mxu0 %v566
    %749 = vmatprep.subr.bf16.mxu0 %v571
    %750 = vmatpush1.bf16.msra.mxu0 %v570
    %751 = vmatprep.subr.bf16.mxu0 %v575
    %752 = vmatpush1.bf16.msra.mxu0 %v574
    %753 = vmatprep.subr.bf16.mxu0 0
    %754 = vmatpush1.bf16.msra.mxu0 0
    %755 = vmatprep.subr.bf16.mxu0 0
    %756 = vmatpush1.bf16.msra.mxu0 0
    %757 = vmatprep.subr.bf16.mxu0 0
    %758 = vmatpush1.bf16.msra.mxu0 0
    %759 = vmatprep.subr.bf16.mxu0 0
    %760 = vmatpush1.bf16.msra.mxu0 0
    %761 = vmatprep.subr.bf16.mxu0 0
    %762 = vmatpush1.bf16.msra.mxu0 0
    %763 = vmatprep.mubr.bf16.mxu0 %v688
    %764 = vmatmul.mubr.bf16.gmra.mrb[0].mxu0 %v141
    %v765 = vpop.f32.mrb[0].mxu0
    %v766 = vadd.f32 %v725, %v765
    %v767 = vpop.f32.mrb[0].mxu0
    %v768 = vadd.f32 %v727, %v767
    %v769 = vpop.f32.mrb[0].mxu0
    %v770 = vpop.f32.mrb[0].mxu0
    %771 = vdwg.mxu0
    %772 = vmatprep.subr.bf16.mxu0 %v473
    %773 = vmatpush1.bf16.msra.mxu0 %v472
    %774 = vmatprep.subr.bf16.mxu0 %v477
    %775 = vmatpush1.bf16.msra.mxu0 %v476
    %776 = vmatprep.subr.bf16.mxu0 %v481
    %777 = vmatpush1.bf16.msra.mxu0 %v480
    %778 = vmatprep.subr.bf16.mxu0 %v485
    %779 = vmatpush1.bf16.msra.mxu0 %v484
    %780 = vmatprep.subr.bf16.mxu0 %v489
    %781 = vmatpush1.bf16.msra.mxu0 %v488
    %782 = vmatprep.subr.bf16.mxu0 %v493
    %783 = vmatpush1.bf16.msra.mxu0 %v492
    %784 = vmatprep.subr.bf16.mxu0 %v497
    %785 = vmatpush1.bf16.msra.mxu0 %v496
    %786 = vmatprep.subr.bf16.mxu0 %v501
    %787 = vmatpush1.bf16.msra.mxu0 %v500
    %788 = vmatprep.subr.bf16.mxu0 %v505
    %789 = vmatpush1.bf16.msra.mxu0 %v504
    %790 = vmatprep.subr.bf16.mxu0 %v509
    %791 = vmatpush1.bf16.msra.mxu0 %v508
    %792 = vmatprep.subr.bf16.mxu0 %v513
    %793 = vmatpush1.bf16.msra.mxu0 %v512
    %794 = vmatprep.subr.bf16.mxu0 %v517
    %795 = vmatpush1.bf16.msra.mxu0 %v516
    %796 = vmatprep.subr.bf16.mxu0 %v521
    %797 = vmatpush1.bf16.msra.mxu0 %v520
    %798 = vmatprep.subr.bf16.mxu0 %v525
    %799 = vmatpush1.bf16.msra.mxu0 %v524
    %800 = vmatprep.subr.bf16.mxu0 %v529
    %801 = vmatpush1.bf16.msra.mxu0 %v528
    %802 = vmatprep.subr.bf16.mxu0 %v533
    %803 = vmatpush1.bf16.msra.mxu0 %v532
    %804 = vmatprep.mubr.bf16.mxu0 %v140
    %805 = vmatmul.mubr.bf16.gmra.mrb[0].mxu0 %v139
    %v806 = vpop.f32.mrb[0].mxu0
    %v807 = vadd.f32 0.0, %v806
    %v808 = vpop.f32.mrb[0].mxu0
    %v809 = vadd.f32 0.0, %v808
    %v810 = vpop.f32.mrb[0].mxu0
    %v811 = vpop.f32.mrb[0].mxu0
    %812 = vdwg.mxu0
    %813 = vmatprep.subr.bf16.mxu0 %v537
    %814 = vmatpush1.bf16.msra.mxu0 %v536
    %815 = vmatprep.subr.bf16.mxu0 %v541
    %816 = vmatpush1.bf16.msra.mxu0 %v540
    %817 = vmatprep.subr.bf16.mxu0 %v545
    %818 = vmatpush1.bf16.msra.mxu0 %v544
    %819 = vmatprep.subr.bf16.mxu0 %v549
    %820 = vmatpush1.bf16.msra.mxu0 %v548
    %821 = vmatprep.subr.bf16.mxu0 %v553
    %822 = vmatpush1.bf16.msra.mxu0 %v552
    %823 = vmatprep.subr.bf16.mxu0 %v557
    %824 = vmatpush1.bf16.msra.mxu0 %v556
    %825 = vmatprep.subr.bf16.mxu0 %v561
    %826 = vmatpush1.bf16.msra.mxu0 %v560
    %827 = vmatprep.subr.bf16.mxu0 %v565
    %828 = vmatpush1.bf16.msra.mxu0 %v564
    %829 = vmatprep.subr.bf16.mxu0 %v569
    %830 = vmatpush1.bf16.msra.mxu0 %v568
    %831 = vmatprep.subr.bf16.mxu0 %v573
    %832 = vmatpush1.bf16.msra.mxu0 %v572
    %833 = vmatprep.subr.bf16.mxu0 %v577
    %834 = vmatpush1.bf16.msra.mxu0 %v576
    %835 = vmatprep.subr.bf16.mxu0 0
    %836 = vmatpush1.bf16.msra.mxu0 0
    %837 = vmatprep.subr.bf16.mxu0 0
    %838 = vmatpush1.bf16.msra.mxu0 0
    %839 = vmatprep.subr.bf16.mxu0 0
    %840 = vmatpush1.bf16.msra.mxu0 0
    %841 = vmatprep.subr.bf16.mxu0 0
    %842 = vmatpush1.bf16.msra.mxu0 0
    %843 = vmatprep.subr.bf16.mxu0 0
    %844 = vmatpush1.bf16.msra.mxu0 0
    %845 = vmatprep.mubr.bf16.mxu0 %v688
    %846 = vmatmul.mubr.bf16.gmra.mrb[0].mxu0 %v141
    %v847 = vpop.f32.mrb[0].mxu0
    %v848 = vadd.f32 %v807, %v847
    %v849 = vpop.f32.mrb[0].mxu0
    %v850 = vadd.f32 %v809, %v849
    %v851 = vpop.f32.mrb[0].mxu0
    %v852 = vpop.f32.mrb[0].mxu0
    %853 = vdwg.mxu0
    %v854 = vmax.f32 %v766, %v848
    %v855 = vmax.f32 %v768, %v850
    %v856 = vmax.f32 %v854, %v855
    %v857 = vlaneseq
    %v858 = vshrl.u32 %v857, 7
    %v859 = vsub.s32 0, %v858
    %v860 = vrot.slane %v22, %v859
    %v861 = vadd.f32 %v856, %v860
    %v862 = vmax.f32 %v861, 0.0
    %863 = vst [vmem:[#allocation2] sm:$0xff] 0.0
    %864 = vst [vmem:[#allocation2 + $0x8] sm:$0xff] 0.0
    %865 = vst [vmem:[#allocation2 + $0x10] sm:$0xff] 0.0
    %866 = vst [vmem:[#allocation2 + $0x8] sm:$0xff] %v862
    %v868 = vrot.slane %v862, 7
    %870 = vst [vmem:[#allocation2] sm:$0xe] %v868
    %v871 = vrot.slane %v862, 1
    %873 = vst [vmem:[#allocation2 + $0x10] sm:$0x7] %v871
    %874 = vst [vmem:[#allocation2] sm:$0xe0] %v868
    %875 = vst [vmem:[#allocation2 + $0x10] sm:$0x70] %v871
    %v876 = vld [vmem:[#allocation2] sm:$0xff]
    %v877 = vld [vmem:[#allocation2 + $0x8] sm:$0xff]
    %v878 = vld [vmem:[#allocation2 + $0x10] sm:$0xff]
    %v879 = vpack.c.bf16 %v876, %v876
    %v880 = vpack.c.bf16 %v877, %v877
    %v881 = vpack.c.bf16 %v878, %v878
    %v882 = vld [vmem:[%s2] sm:$0xff]
    %v883 = vld [vmem:[%s2 + $0x8] sm:$0xff]
    %v884 = vld [vmem:[%s2 + $0x10] sm:$0xff]
    %v885 = vld [vmem:[%s2 + $0x18] sm:$0xff]
    %v886 = vld [vmem:[%s2 + $0x20] sm:$0xff]
    %v887 = vld [vmem:[%s2 + $0x28] sm:$0xff]
    %v888 = vld [vmem:[%s2 + $0x30] sm:$0xff]
    %v889 = vld [vmem:[%s2 + $0x38] sm:$0xff]
    %v890 = vld [vmem:[%s2 + $0x40] sm:$0xff]
    %v891 = vld [vmem:[%s2 + $0x48] sm:$0xff]
    %v892 = vld [vmem:[%s2 + $0x50] sm:$0xff]
    %v893 = vld [vmem:[%s2 + $0x58] sm:$0xff]
    %v894 = vld [vmem:[%s2 + $0x60] sm:$0xff]
    %v895 = vld [vmem:[%s2 + $0x68] sm:$0xff]
    %v896 = vld [vmem:[%s2 + $0x70] sm:$0xff]
    %v897 = vld [vmem:[%s2 + $0x78] sm:$0xff]
    %v898 = vld [vmem:[%s2 + $0x80] sm:$0xff]
    %v899 = vld [vmem:[%s2 + $0x88] sm:$0xff]
    %v900 = vld [vmem:[%s2 + $0x90] sm:$0xff]
    %v901 = vld [vmem:[%s2 + $0x98] sm:$0xff]
    %v902 = vld [vmem:[%s2 + $0xa0] sm:$0xff]
    %v903 = vld [vmem:[%s2 + $0xa8] sm:$0xff]
    %v904 = vld [vmem:[%s2 + $0xb0] sm:$0xff]
    %v905 = vld [vmem:[%s2 + $0xb8] sm:$0xff]
    %v906 = vld [vmem:[%s2 + $0xc0] sm:$0xff]
    %v907 = vld [vmem:[%s2 + $0xc8] sm:$0xff]
    %v908 = vld [vmem:[%s2 + $0xd0] sm:$0xff]
    %v909 = vld [vmem:[%s2 + $0xd8] sm:$0xff]
    %v910 = vld [vmem:[%s2 + $0xe0] sm:$0xff]
    %v911 = vld [vmem:[%s2 + $0xe8] sm:$0xff]
    %v912 = vld [vmem:[%s2 + $0xf0] sm:$0xff]
    %v913 = vld [vmem:[%s2 + $0xf8] sm:$0xff]
    %v914 = vld [vmem:[%s2 + $0x100] sm:$0xff]
    %v915 = vld [vmem:[%s2 + $0x108] sm:$0xff]
    %v916 = vld [vmem:[%s2 + $0x110] sm:$0xff]
    %v917 = vld [vmem:[%s2 + $0x118] sm:$0xff]
    %v918 = vld [vmem:[%s2 + $0x120] sm:$0xff]
    %v919 = vld [vmem:[%s2 + $0x128] sm:$0xff]
    %v920 = vld [vmem:[%s2 + $0x130] sm:$0xff]
    %v921 = vld [vmem:[%s2 + $0x138] sm:$0xff]
    %v922 = vld [vmem:[%s2 + $0x140] sm:$0xff]
    %v923 = vld [vmem:[%s2 + $0x148] sm:$0xff]
    %v924 = vld [vmem:[%s2 + $0x150] sm:$0xff]
    %v925 = vld [vmem:[%s2 + $0x158] sm:$0xff]
    %v926 = vld [vmem:[%s2 + $0x160] sm:$0xff]
    %v927 = vld [vmem:[%s2 + $0x168] sm:$0xff]
    %v928 = vld [vmem:[%s2 + $0x170] sm:$0xff]
    %v929 = vld [vmem:[%s2 + $0x178] sm:$0xff]
    %v978 = vunpack.c.l.b16 %v882
    %v979 = vunpack.c.h.b16 %v882
    %v980 = vunpack.c.l.b16 %v883
    %v981 = vunpack.c.h.b16 %v883
    %v982 = vunpack.c.l.b16 %v884
    %v983 = vunpack.c.h.b16 %v884
    %v984 = vunpack.c.l.b16 %v885
    %v985 = vunpack.c.h.b16 %v885
    %v986 = vunpack.c.l.b16 %v886
    %v987 = vunpack.c.h.b16 %v886
    %v988 = vunpack.c.l.b16 %v887
    %v989 = vunpack.c.h.b16 %v887
    %v990 = vunpack.c.l.b16 %v888
    %v991 = vunpack.c.h.b16 %v888
    %v992 = vunpack.c.l.b16 %v889
    %v993 = vunpack.c.h.b16 %v889
    %v994 = vunpack.c.l.b16 %v890
    %v995 = vunpack.c.h.b16 %v890
    %v996 = vunpack.c.l.b16 %v891
    %v997 = vunpack.c.h.b16 %v891
    %v998 = vunpack.c.l.b16 %v892
    %v999 = vunpack.c.h.b16 %v892
    %v1000 = vunpack.c.l.b16 %v893
    %v1001 = vunpack.c.h.b16 %v893
    %v1002 = vunpack.c.l.b16 %v894
    %v1003 = vunpack.c.h.b16 %v894
    %v1004 = vunpack.c.l.b16 %v895
    %v1005 = vunpack.c.h.b16 %v895
    %v1006 = vunpack.c.l.b16 %v896
    %v1007 = vunpack.c.h.b16 %v896
    %v1008 = vunpack.c.l.b16 %v897
    %v1009 = vunpack.c.h.b16 %v897
    %v1010 = vunpack.c.l.b16 %v898
    %v1011 = vunpack.c.h.b16 %v898
    %v1012 = vunpack.c.l.b16 %v899
    %v1013 = vunpack.c.h.b16 %v899
    %v1014 = vunpack.c.l.b16 %v900
    %v1015 = vunpack.c.h.b16 %v900
    %v1016 = vunpack.c.l.b16 %v901
    %v1017 = vunpack.c.h.b16 %v901
    %v1018 = vunpack.c.l.b16 %v902
    %v1019 = vunpack.c.h.b16 %v902
    %v1020 = vunpack.c.l.b16 %v903
    %v1021 = vunpack.c.h.b16 %v903
    %v1022 = vunpack.c.l.b16 %v904
    %v1023 = vunpack.c.h.b16 %v904
    %v1024 = vunpack.c.l.b16 %v905
    %v1025 = vunpack.c.h.b16 %v905
    %v1026 = vunpack.c.l.b16 %v906
    %v1027 = vunpack.c.h.b16 %v906
    %v1028 = vunpack.c.l.b16 %v907
    %v1029 = vunpack.c.h.b16 %v907
    %v1030 = vunpack.c.l.b16 %v908
    %v1031 = vunpack.c.h.b16 %v908
    %v1032 = vunpack.c.l.b16 %v909
    %v1033 = vunpack.c.h.b16 %v909
    %v1034 = vunpack.c.l.b16 %v910
    %v1035 = vunpack.c.h.b16 %v910
    %v1036 = vunpack.c.l.b16 %v911
    %v1037 = vunpack.c.h.b16 %v911
    %v1038 = vunpack.c.l.b16 %v912
    %v1039 = vunpack.c.h.b16 %v912
    %v1040 = vunpack.c.l.b16 %v913
    %v1041 = vunpack.c.h.b16 %v913
    %v1042 = vunpack.c.l.b16 %v914
    %v1043 = vunpack.c.h.b16 %v914
    %v1044 = vunpack.c.l.b16 %v915
    %v1045 = vunpack.c.h.b16 %v915
    %v1046 = vunpack.c.l.b16 %v916
    %v1047 = vunpack.c.h.b16 %v916
    %v1048 = vunpack.c.l.b16 %v917
    %v1049 = vunpack.c.h.b16 %v917
    %v1050 = vunpack.c.l.b16 %v918
    %v1051 = vunpack.c.h.b16 %v918
    %v1052 = vunpack.c.l.b16 %v919
    %v1053 = vunpack.c.h.b16 %v919
    %v1054 = vunpack.c.l.b16 %v920
    %v1055 = vunpack.c.h.b16 %v920
    %v1056 = vunpack.c.l.b16 %v921
    %v1057 = vunpack.c.h.b16 %v921
    %v1058 = vunpack.c.l.b16 %v922
    %v1059 = vunpack.c.h.b16 %v922
    %v1060 = vunpack.c.l.b16 %v923
    %v1061 = vunpack.c.h.b16 %v923
    %v1062 = vunpack.c.l.b16 %v924
    %v1063 = vunpack.c.h.b16 %v924
    %v1064 = vunpack.c.l.b16 %v925
    %v1065 = vunpack.c.h.b16 %v925
    %v1066 = vunpack.c.l.b16 %v926
    %v1067 = vunpack.c.h.b16 %v926
    %v1068 = vunpack.c.l.b16 %v927
    %v1069 = vunpack.c.h.b16 %v927
    %v1070 = vunpack.c.l.b16 %v928
    %v1071 = vunpack.c.h.b16 %v928
    %v1072 = vunpack.c.l.b16 %v929
    %v1073 = vunpack.c.h.b16 %v929
    %v1074 = vpack.c.b16 %v980, %v978
    %v1075 = vpack.c.b16 %v981, %v979
    %v1076 = vpack.c.b16 %v984, %v982
    %v1077 = vpack.c.b16 %v985, %v983
    %v1078 = vpack.c.b16 %v988, %v986
    %v1079 = vpack.c.b16 %v989, %v987
    %v1080 = vpack.c.b16 %v992, %v990
    %v1081 = vpack.c.b16 %v993, %v991
    %v1082 = vpack.c.b16 %v996, %v994
    %v1083 = vpack.c.b16 %v997, %v995
    %v1084 = vpack.c.b16 %v1000, %v998
    %v1085 = vpack.c.b16 %v1001, %v999
    %v1086 = vpack.c.b16 %v1004, %v1002
    %v1087 = vpack.c.b16 %v1005, %v1003
    %v1088 = vpack.c.b16 %v1008, %v1006
    %v1089 = vpack.c.b16 %v1009, %v1007
    %v1090 = vpack.c.b16 %v1012, %v1010
    %v1091 = vpack.c.b16 %v1013, %v1011
    %v1092 = vpack.c.b16 %v1016, %v1014
    %v1093 = vpack.c.b16 %v1017, %v1015
    %v1094 = vpack.c.b16 %v1020, %v1018
    %v1095 = vpack.c.b16 %v1021, %v1019
    %v1096 = vpack.c.b16 %v1024, %v1022
    %v1097 = vpack.c.b16 %v1025, %v1023
    %v1098 = vpack.c.b16 %v1028, %v1026
    %v1099 = vpack.c.b16 %v1029, %v1027
    %v1100 = vpack.c.b16 %v1032, %v1030
    %v1101 = vpack.c.b16 %v1033, %v1031
    %v1102 = vpack.c.b16 %v1036, %v1034
    %v1103 = vpack.c.b16 %v1037, %v1035
    %v1104 = vpack.c.b16 %v1040, %v1038
    %v1105 = vpack.c.b16 %v1041, %v1039
    %v1106 = vpack.c.b16 %v1044, %v1042
    %v1107 = vpack.c.b16 %v1045, %v1043
    %v1108 = vpack.c.b16 %v1048, %v1046
    %v1109 = vpack.c.b16 %v1049, %v1047
    %v1110 = vpack.c.b16 %v1052, %v1050
    %v1111 = vpack.c.b16 %v1053, %v1051
    %v1112 = vpack.c.b16 %v1056, %v1054
    %v1113 = vpack.c.b16 %v1057, %v1055
    %v1114 = vpack.c.b16 %v1060, %v1058
    %v1115 = vpack.c.b16 %v1061, %v1059
    %v1116 = vpack.c.b16 %v1064, %v1062
    %v1117 = vpack.c.b16 %v1065, %v1063
    %v1118 = vpack.c.b16 %v1068, %v1066
    %v1119 = vpack.c.b16 %v1069, %v1067
    %v1120 = vpack.c.b16 %v1072, %v1070
    %v1121 = vpack.c.b16 %v1073, %v1071
    %1170 = vmatprep.subr.bf16.mxu0 %v1075
    %1171 = vmatpush1.bf16.msra.mxu0 %v1074
    %1172 = vmatprep.subr.bf16.mxu0 %v1077
    %1173 = vmatpush1.bf16.msra.mxu0 %v1076
    %1174 = vmatprep.subr.bf16.mxu0 %v1079
    %1175 = vmatpush1.bf16.msra.mxu0 %v1078
    %1176 = vmatprep.subr.bf16.mxu0 %v1081
    %1177 = vmatpush1.bf16.msra.mxu0 %v1080
    %1178 = vmatprep.subr.bf16.mxu0 %v1083
    %1179 = vmatpush1.bf16.msra.mxu0 %v1082
    %1180 = vmatprep.subr.bf16.mxu0 %v1085
    %1181 = vmatpush1.bf16.msra.mxu0 %v1084
    %1182 = vmatprep.subr.bf16.mxu0 %v1087
    %1183 = vmatpush1.bf16.msra.mxu0 %v1086
    %1184 = vmatprep.subr.bf16.mxu0 %v1089
    %1185 = vmatpush1.bf16.msra.mxu0 %v1088
    %1186 = vmatprep.subr.bf16.mxu0 %v1091
    %1187 = vmatpush1.bf16.msra.mxu0 %v1090
    %1188 = vmatprep.subr.bf16.mxu0 %v1093
    %1189 = vmatpush1.bf16.msra.mxu0 %v1092
    %1190 = vmatprep.subr.bf16.mxu0 %v1095
    %1191 = vmatpush1.bf16.msra.mxu0 %v1094
    %1192 = vmatprep.subr.bf16.mxu0 %v1097
    %1193 = vmatpush1.bf16.msra.mxu0 %v1096
    %1194 = vmatprep.subr.bf16.mxu0 %v1099
    %1195 = vmatpush1.bf16.msra.mxu0 %v1098
    %1196 = vmatprep.subr.bf16.mxu0 %v1101
    %1197 = vmatpush1.bf16.msra.mxu0 %v1100
    %1198 = vmatprep.subr.bf16.mxu0 %v1103
    %1199 = vmatpush1.bf16.msra.mxu0 %v1102
    %1200 = vmatprep.subr.bf16.mxu0 %v1105
    %1201 = vmatpush1.bf16.msra.mxu0 %v1104
    %1202 = vmatprep.mubr.bf16.mxu0 %v880
    %1203 = vmatmul.mubr.bf16.gmra.mrb[0].mxu0 %v879
    %v1204 = vpop.f32.mrb[0].mxu0
    %v1205 = vadd.f32 0.0, %v1204
    %v1206 = vpop.f32.mrb[0].mxu0
    %v1207 = vadd.f32 0.0, %v1206
    %v1208 = vpop.f32.mrb[0].mxu0
    %v1209 = vpop.f32.mrb[0].mxu0
    %1210 = vdwg.mxu0
    %1211 = vmatprep.subr.bf16.mxu0 %v1107
    %1212 = vmatpush1.bf16.msra.mxu0 %v1106
    %1213 = vmatprep.subr.bf16.mxu0 %v1109
    %1214 = vmatpush1.bf16.msra.mxu0 %v1108
    %1215 = vmatprep.subr.bf16.mxu0 %v1111
    %1216 = vmatpush1.bf16.msra.mxu0 %v1110
    %1217 = vmatprep.subr.bf16.mxu0 %v1113
    %1218 = vmatpush1.bf16.msra.mxu0 %v1112
    %1219 = vmatprep.subr.bf16.mxu0 %v1115
    %1220 = vmatpush1.bf16.msra.mxu0 %v1114
    %1221 = vmatprep.subr.bf16.mxu0 %v1117
    %1222 = vmatpush1.bf16.msra.mxu0 %v1116
    %1223 = vmatprep.subr.bf16.mxu0 %v1119
    %1224 = vmatpush1.bf16.msra.mxu0 %v1118
    %1225 = vmatprep.subr.bf16.mxu0 %v1121
    %1226 = vmatpush1.bf16.msra.mxu0 %v1120
    %1227 = vmatprep.subr.bf16.mxu0 0
    %1228 = vmatpush1.bf16.msra.mxu0 0
    %1229 = vmatprep.subr.bf16.mxu0 0
    %1230 = vmatpush1.bf16.msra.mxu0 0
    %1231 = vmatprep.subr.bf16.mxu0 0
    %1232 = vmatpush1.bf16.msra.mxu0 0
    %1233 = vmatprep.subr.bf16.mxu0 0
    %1234 = vmatpush1.bf16.msra.mxu0 0
    %1235 = vmatprep.subr.bf16.mxu0 0
    %1236 = vmatpush1.bf16.msra.mxu0 0
    %1237 = vmatprep.subr.bf16.mxu0 0
    %1238 = vmatpush1.bf16.msra.mxu0 0
    %1239 = vmatprep.subr.bf16.mxu0 0
    %1240 = vmatpush1.bf16.msra.mxu0 0
    %1241 = vmatprep.subr.bf16.mxu0 0
    %1242 = vmatpush1.bf16.msra.mxu0 0
    %1243 = vmatprep.mubr.bf16.mxu0 0
    %1244 = vmatmul.mubr.bf16.gmra.mrb[0].mxu0 %v881
    %v1245 = vpop.f32.mrb[0].mxu0
    %v1246 = vadd.f32 %v1205, %v1245
    %v1247 = vpop.f32.mrb[0].mxu0
    %v1248 = vadd.f32 %v1207, %v1247
    %v1249 = vpop.f32.mrb[0].mxu0
    %v1250 = vpop.f32.mrb[0].mxu0
    %1251 = vdwg.mxu0
    %v1252 = vmax.f32 %v1246, %v1248
    %1254 = vrot.lane.b32.xlu0 %v1252, 64
    %v1255 = vpop.permute.xlu0 %1254
    %v1257 = vmax.f32 %v1252, %v1255
    %v1258 = vlaneseq
    %v1259 = vshrl.u32 %v1258, 7
    %v1260 = vsub.s32 1, %v1259
    %v1261 = vrot.slane %v22, %v1260
    %v1262 = vadd.f32 %v1257, %v1261
    %v1263 = vmax.f32 %v1262, 0.0
    %vm1264 = vcmask 516096
    %1265 = vst.msk [vmem:[#allocation3] sm:$0x1] %vm1264, %v1263
    %v1268 = vunpack.c.l.s4 1983009808
    %v1269 = vunpack.c.0.s8 %v1268
    %v1270 = vlaneseq
    %v1271 = vshrl.u32 %v1270, 7
    %v1272 = vsub.s32 %v1269, %v1271
    %v1273 = vrot.slane %v1263, %v1272
    %v1274 = vrot.slane %v1273, 7
    %v1275 = vrot.slane %v1274, 2
    %1276 = vrot.lane.b32.xlu0 %v1275, 64
    %v1277 = vpop.permute.xlu0 %1276
    %vm1279 = vcmask 1040896
    %1280 = vst.msk [vmem:[#allocation3] sm:$0x1] %vm1279, %v1277
    %v1281 = vcombine.high %v1273, %v1273
    %1283 = vst.msk [vmem:[#allocation3 + $0x2] sm:$0x1] %vm1264, %v1281
    %v1284 = vrot.slane %v1281, 7
    %v1285 = vrot.slane %v1284, 2
    %1286 = vrot.lane.b32.xlu0 %v1285, 64
    %v1287 = vpop.permute.xlu0 %1286
    %1289 = vst.msk [vmem:[#allocation3 + $0x2] sm:$0x1] %vm1279, %v1287
    %v1290 = vcombine.high %v1263, %v1263
    %v1292 = vunpack.c.l.s4 1983009808
    %v1293 = vunpack.c.0.s8 %v1292
    %v1294 = vlaneseq
    %v1295 = vshrl.u32 %v1294, 7
    %v1296 = vsub.s32 %v1293, %v1295
    %v1297 = vrot.slane %v1290, %v1296
    %1299 = vst.msk [vmem:[#allocation3 + $0x1] sm:$0x1] %vm1264, %v1297
    %v1300 = vrot.slane %v1297, 7
    %v1301 = vrot.slane %v1300, 2
    %1302 = vrot.lane.b32.xlu0 %v1301, 64
    %v1303 = vpop.permute.xlu0 %1302
    %1305 = vst.msk [vmem:[#allocation3 + $0x1] sm:$0x1] %vm1279, %v1303
    %v1306 = vcombine.high %v1297, %v1297
    %1308 = vst.msk [vmem:[#allocation3 + $0x3] sm:$0x1] %vm1264, %v1306
    %v1309 = vrot.slane %v1306, 7
    %v1310 = vrot.slane %v1309, 2
    %1311 = vrot.lane.b32.xlu0 %v1310, 64
    %v1312 = vpop.permute.xlu0 %1311
    %1314 = vst.msk [vmem:[#allocation3 + $0x3] sm:$0x1] %vm1279, %v1312
    %v1315 = vld [vmem:[%s3] sm:$0xf]
    %v1316 = vld [vmem:[%s3 + $0x4] sm:$0xf]
    %v1317 = vld [vmem:[%s3 + $0x8] sm:$0xf]
    %v1318 = vld [vmem:[%s3 + $0xc] sm:$0xf]
    %v1319 = vld [vmem:[%s3 + $0x10] sm:$0xf]
    %v1320 = vld [vmem:[%s3 + $0x14] sm:$0xf]
    %v1321 = vld [vmem:[%s3 + $0x18] sm:$0xf]
    %v1322 = vld [vmem:[%s3 + $0x1c] sm:$0xf]
    %v1323 = vld [vmem:[%s3 + $0x20] sm:$0xf]
    %v1324 = vld [vmem:[%s3 + $0x24] sm:$0xf]
    %v1325 = vld [vmem:[%s3 + $0x28] sm:$0xf]
    %v1326 = vld [vmem:[%s3 + $0x2c] sm:$0xf]
    %v1327 = vld [vmem:[%s3 + $0x30] sm:$0xf]
    %v1328 = vld [vmem:[%s3 + $0x34] sm:$0xf]
    %v1329 = vld [vmem:[%s3 + $0x38] sm:$0xf]
    %v1330 = vld [vmem:[%s3 + $0x3c] sm:$0xf]
    %v1331 = vld [vmem:[%s3 + $0x40] sm:$0xf]
    %v1332 = vld [vmem:[%s3 + $0x44] sm:$0xf]
    %v1333 = vld [vmem:[%s3 + $0x48] sm:$0xf]
    %v1334 = vld [vmem:[%s3 + $0x4c] sm:$0xf]
    %v1335 = vld [vmem:[%s3 + $0x50] sm:$0xf]
    %v1336 = vld [vmem:[%s3 + $0x54] sm:$0xf]
    %v1337 = vld [vmem:[%s3 + $0x58] sm:$0xf]
    %v1338 = vld [vmem:[%s3 + $0x5c] sm:$0xf]
    %v1339 = vld [vmem:[%s3 + $0x60] sm:$0xf]
    %v1340 = vld [vmem:[%s3 + $0x64] sm:$0xf]
    %v1341 = vld [vmem:[%s3 + $0x68] sm:$0xf]
    %v1342 = vld [vmem:[%s3 + $0x6c] sm:$0xf]
    %v1343 = vld [vmem:[%s3 + $0x70] sm:$0xf]
    %v1344 = vld [vmem:[%s3 + $0x74] sm:$0xf]
    %v1345 = vld [vmem:[%s3 + $0x78] sm:$0xf]
    %v1346 = vld [vmem:[%s3 + $0x7c] sm:$0xf]
    %v1347 = vld [vmem:[%s3 + $0x80] sm:$0xf]
    %v1348 = vld [vmem:[%s3 + $0x84] sm:$0xf]
    %v1349 = vld [vmem:[%s3 + $0x88] sm:$0xf]
    %v1350 = vld [vmem:[%s3 + $0x8c] sm:$0xf]
    %v1351 = vld [vmem:[#allocation3] sm:$0xf]
    %v1354 = vunpack.c.l.s4 1983009808
    %v1355 = vunpack.c.0.s8 %v1354
    %v1356 = vlaneseq
    %v1357 = vshrl.u32 %v1356, 7
    %v1358 = vsub.s32 %v1355, %v1357
    %v1359 = vrot.slane %v1351, %v1358
    %v1360 = vcombine.high %v1359, %v1359
    %v1363 = vpack.c.bf16 %v1359, %v1359
    %v1364 = vpack.c.bf16 %v1360, %v1360
    %v1365 = vlaneseq
    %v1366 = vshrl.u32 %v1365, 7
    %v1367 = vsub.s32 2, %v1366
    %v1368 = vrot.slane %v22, %v1367
    %v1401 = vunpack.c.l.b16 %v1315
    %v1402 = vunpack.c.l.b16 %v1316
    %v1403 = vunpack.c.l.b16 %v1317
    %v1404 = vunpack.c.l.b16 %v1318
    %v1405 = vunpack.c.l.b16 %v1319
    %v1406 = vunpack.c.l.b16 %v1320
    %v1407 = vunpack.c.l.b16 %v1321
    %v1408 = vunpack.c.l.b16 %v1322
    %v1409 = vunpack.c.l.b16 %v1323
    %v1410 = vunpack.c.l.b16 %v1324
    %v1411 = vunpack.c.l.b16 %v1325
    %v1412 = vunpack.c.l.b16 %v1326
    %v1413 = vunpack.c.l.b16 %v1327
    %v1414 = vunpack.c.l.b16 %v1328
    %v1415 = vunpack.c.l.b16 %v1329
    %v1416 = vunpack.c.l.b16 %v1330
    %v1417 = vunpack.c.l.b16 %v1331
    %v1418 = vunpack.c.l.b16 %v1332
    %v1419 = vunpack.c.l.b16 %v1333
    %v1420 = vunpack.c.l.b16 %v1334
    %v1421 = vunpack.c.l.b16 %v1335
    %v1422 = vunpack.c.l.b16 %v1336
    %v1423 = vunpack.c.l.b16 %v1337
    %v1424 = vunpack.c.l.b16 %v1338
    %v1425 = vunpack.c.l.b16 %v1339
    %v1426 = vunpack.c.l.b16 %v1340
    %v1427 = vunpack.c.l.b16 %v1341
    %v1428 = vunpack.c.l.b16 %v1342
    %v1429 = vunpack.c.l.b16 %v1343
    %v1430 = vunpack.c.l.b16 %v1344
    %v1431 = vunpack.c.l.b16 %v1345
    %v1432 = vunpack.c.l.b16 %v1346
    %v1433 = vpack.c.b16 %v1402, %v1401
    %v1434 = vpack.c.b16 %v1404, %v1403
    %v1435 = vpack.c.b16 %v1406, %v1405
    %v1436 = vpack.c.b16 %v1408, %v1407
    %v1437 = vpack.c.b16 %v1410, %v1409
    %v1438 = vpack.c.b16 %v1412, %v1411
    %v1439 = vpack.c.b16 %v1414, %v1413
    %v1440 = vpack.c.b16 %v1416, %v1415
    %v1441 = vpack.c.b16 %v1418, %v1417
    %v1442 = vpack.c.b16 %v1420, %v1419
    %v1443 = vpack.c.b16 %v1422, %v1421
    %v1444 = vpack.c.b16 %v1424, %v1423
    %v1445 = vpack.c.b16 %v1426, %v1425
    %v1446 = vpack.c.b16 %v1428, %v1427
    %v1447 = vpack.c.b16 %v1430, %v1429
    %v1448 = vpack.c.b16 %v1432, %v1431
    %1465 = vmatprep.subr.bf16.mxu0 0
    %1466 = vmatpush1.bf16.msra.mxu0 %v1433
    %1467 = vmatprep.subr.bf16.mxu0 0
    %1468 = vmatpush1.bf16.msra.mxu0 %v1434
    %1469 = vmatprep.subr.bf16.mxu0 0
    %1470 = vmatpush1.bf16.msra.mxu0 %v1435
    %1471 = vmatprep.subr.bf16.mxu0 0
    %1472 = vmatpush1.bf16.msra.mxu0 %v1436
    %1473 = vmatprep.subr.bf16.mxu0 0
    %1474 = vmatpush1.bf16.msra.mxu0 %v1437
    %1475 = vmatprep.subr.bf16.mxu0 0
    %1476 = vmatpush1.bf16.msra.mxu0 %v1438
    %1477 = vmatprep.subr.bf16.mxu0 0
    %1478 = vmatpush1.bf16.msra.mxu0 %v1439
    %1479 = vmatprep.subr.bf16.mxu0 0
    %1480 = vmatpush1.bf16.msra.mxu0 %v1440
    %1481 = vmatprep.subr.bf16.mxu0 0
    %1482 = vmatpush1.bf16.msra.mxu0 %v1441
    %1483 = vmatprep.subr.bf16.mxu0 0
    %1484 = vmatpush1.bf16.msra.mxu0 %v1442
    %1485 = vmatprep.subr.bf16.mxu0 0
    %1486 = vmatpush1.bf16.msra.mxu0 %v1443
    %1487 = vmatprep.subr.bf16.mxu0 0
    %1488 = vmatpush1.bf16.msra.mxu0 %v1444
    %1489 = vmatprep.subr.bf16.mxu0 0
    %1490 = vmatpush1.bf16.msra.mxu0 %v1445
    %1491 = vmatprep.subr.bf16.mxu0 0
    %1492 = vmatpush1.bf16.msra.mxu0 %v1446
    %1493 = vmatprep.subr.bf16.mxu0 0
    %1494 = vmatpush1.bf16.msra.mxu0 %v1447
    %1495 = vmatprep.subr.bf16.mxu0 0
    %1496 = vmatpush1.bf16.msra.mxu0 %v1448
    %1497 = vmatprep.mubr.bf16.mxu0 %v1364
    %1498 = vmatmul.mubr.bf16.gmra.mrb[0].mxu0 %v1363
    %v1499 = vpop.f32.mrb[0].mxu0
    %v1500 = vadd.f32 %v1368, %v1499
    %v1501 = vpop.f32.mrb[0].mxu0
    %v1502 = vpop.f32.mrb[0].mxu0
    %v1503 = vpop.f32.mrb[0].mxu0
    %1504 = vdwg.mxu0
    %v1505 = vmax.f32 %v1500, 0.0
    %v1506 = vpack.c.bf16 %v1505, %v1505
    %v1507 = vlaneseq
    %v1508 = vshrl.u32 %v1507, 7
    %v1509 = vsub.s32 3, %v1508
    %v1510 = vrot.slane %v22, %v1509
    %v1515 = vunpack.c.l.b16 %v1347
    %v1516 = vunpack.c.l.b16 %v1348
    %v1517 = vunpack.c.l.b16 %v1349
    %v1518 = vunpack.c.l.b16 %v1350
    %v1519 = vpack.c.b16 %v1516, %v1515
    %v1520 = vpack.c.b16 %v1518, %v1517
    %vm1523 = vcmask 261120
    %v1525 = vsel %vm1523, %v1506, 0
    %1527 = vmatprep.subr.bf16.mxu0 0
    %1528 = vmatpush1.bf16.msra.mxu0 %v1519
    %1529 = vmatprep.subr.bf16.mxu0 0
    %1530 = vmatpush1.bf16.msra.mxu0 %v1520
    %1531 = vmatprep.subr.bf16.mxu0 0
    %1532 = vmatpush1.bf16.msra.mxu0 0
    %1533 = vmatprep.subr.bf16.mxu0 0
    %1534 = vmatpush1.bf16.msra.mxu0 0
    %1535 = vmatprep.subr.bf16.mxu0 0
    %1536 = vmatpush1.bf16.msra.mxu0 0
    %1537 = vmatprep.subr.bf16.mxu0 0
    %1538 = vmatpush1.bf16.msra.mxu0 0
    %1539 = vmatprep.subr.bf16.mxu0 0
    %1540 = vmatpush1.bf16.msra.mxu0 0
    %1541 = vmatprep.subr.bf16.mxu0 0
    %1542 = vmatpush1.bf16.msra.mxu0 0
    %1543 = vmatprep.subr.bf16.mxu0 0
    %1544 = vmatpush1.bf16.msra.mxu0 0
    %1545 = vmatprep.subr.bf16.mxu0 0
    %1546 = vmatpush1.bf16.msra.mxu0 0
    %1547 = vmatprep.subr.bf16.mxu0 0
    %1548 = vmatpush1.bf16.msra.mxu0 0
    %1549 = vmatprep.subr.bf16.mxu0 0
    %1550 = vmatpush1.bf16.msra.mxu0 0
    %1551 = vmatprep.subr.bf16.mxu0 0
    %1552 = vmatpush1.bf16.msra.mxu0 0
    %1553 = vmatprep.subr.bf16.mxu0 0
    %1554 = vmatpush1.bf16.msra.mxu0 0
    %1555 = vmatprep.subr.bf16.mxu0 0
    %1556 = vmatpush1.bf16.msra.mxu0 0
    %1557 = vmatprep.subr.bf16.mxu0 0
    %1558 = vmatpush1.bf16.msra.mxu0 0
    %1559 = vmatprep.mubr.bf16.mxu0 0
    %1560 = vmatmul.mubr.bf16.gmra.mrb[0].mxu0 %v1525
    %v1561 = vpop.f32.mrb[0].mxu0
    %v1562 = vadd.f32 %v1510, %v1561
    %v1563 = vpop.f32.mrb[0].mxu0
    %v1564 = vpop.f32.mrb[0].mxu0
    %v1565 = vpop.f32.mrb[0].mxu0
    %1566 = vdwg.mxu0
    %vm1567 = vcmask 33792
    %v1568 = vsel %vm1567, %v1562, -inf
    %1569 = vmax.xlane.f32.xlu0 %v1568
    %v1570 = vpop.xlane.xlu0 %1569
    %v1571 = vsub.f32 %v1562, %v1570
    %v1572 = vmul.f32 %v1571, 1.442695
    %v1573 = vpow.pop %v1572
    %v1574 = vsel %vm1567, %v1573, 0.0
    %1575 = vadd.xlane.f32.xlu0 %v1574
    %v1576 = vpop.xlane.xlu0 %1575
    %v1577 = vrcp.pop %v1576
    %v1578 = vmul.f32 %v1573, %v1577
    %1579 = vst.msk [vmem:[#allocation4] sm:$0x3] %vm1567, %v1578
    // Predicated region
    $region22: #{convnet_forward_pallas.1} parent=1 // pred_check
      _
    $region23: #{convnet_forward_pallas.1} parent=1 // pred_check_branch
      %1581 = sbr.rel (0) target = $region25
    $region24: #{convnet_forward_pallas.1} parent=1 // pred_region
      %s1583 = ssub.s32 32, 32
      %1584 = vsyncadd [#allocation5], %s1583
      %s1586 = sshll.u32 [#allocation4], 4
      %s1587 = int_to_ptr.vmem [resolvable:$true] %s1586
      %1589 = dma.vmem_to_hbm [thread:$0]  %s1587, 32, %s5, [#allocation5]
    $region25: #{convnet_forward_pallas.1} parent=1 // pred_fallthru
      _
    // Predicated region
    $region26: #{convnet_forward_pallas.1} parent=1 // pred_check
      _
    $region27: #{convnet_forward_pallas.1} parent=1 // pred_check_branch
      %1591 = sbr.rel (0) target = $region29
    $region28: #{convnet_forward_pallas.1} parent=1 // pred_region
      %1592 = dma.done [#allocation5], 32
    $region29: #{convnet_forward_pallas.1} parent=1 // pred_fallthru
      _
    %1593 = vsyncpa [#allocation5], 1

</llo_original>
